<compile_context>
chip_gen: v6e
topology: v6e:2x2x1
jax: 0.10.0
libtpu: 0.0.40
codegen_flags: <defaults>
</compile_context>

<pallas_src>
import math
import jax
import jax.numpy as jnp
from jax import lax
from jax.experimental import pallas as pl
from jax.experimental.pallas import tpu as pltpu


# --------------------------------------------------------------------------- #
# VMEM footprint estimate ((8,128)-tiled, f32)
# --------------------------------------------------------------------------- #
def _ceil_to(a, b):
    return -(-a // b) * b


def _padded_vmem_bytes(shape, itemsize=4):
    if len(shape) == 0:
        return 8 * 128 * itemsize
    if len(shape) == 1:
        return 8 * _ceil_to(int(shape[0]), 128) * itemsize
    lead = 1
    for d in shape[:-2]:
        lead *= int(d)
    return lead * _ceil_to(int(shape[-2]), 8) * _ceil_to(int(shape[-1]), 128) * itemsize


# --------------------------------------------------------------------------- #
# Kernel
# --------------------------------------------------------------------------- #
def _make_kernel(lambda_, n_steps, unroll, eps=1e-5):
    lam = float(lambda_)

    def kernel(h_ref, cn_ref, v0_ref,                  # SMEM: h table, sigma*sqrt(h) table, v0 scalar
               gv0_ref, x0_ref, xi_ref,                # VMEM: grad_v0 (1,dim), x0, noise stack
               w1_ref, g1_ref, be1_ref,                # hidden layer 1 stacks
               w2_ref, g2_ref, be2_ref,                # hidden layer 2 stacks
               w3_ref, b3_ref,                         # output layer stacks
               v_out_ref, x_out_ref):

        def bn_relu(y, gamma, beta):
            # nn.BatchNorm1d in TRAINING mode: biased batch statistics.
            # One-pass var = E[y^2] - mean^2 -> both XLU reductions issue off
            # the same matmul result (no mean -> centre -> mean round trip).
            mean = jnp.mean(y, axis=0, keepdims=True)
            mean_sq = jnp.mean(y * y, axis=0, keepdims=True)
            var = mean_sq - mean * mean
            return jnp.maximum((y - mean) * lax.rsqrt(var + eps) * gamma + beta, 0.0)

        # ------------- step 0 prologue: learned grad_v0 (no weights) ---------
        lamh0 = lam * h_ref[0]
        gv0 = gv0_ref[...]                                       # (1, dim)
        noise0 = cn_ref[0] * xi_ref[0]                           # (batch, dim)
        # v1 = v0 - lam*h*||gv0||^2 + <noise0, gv0>   (single fused reduction)
        v = v0_ref[0] + jnp.sum(gv0 * (noise0 - lamh0 * gv0), axis=1, keepdims=True)
        x = x0_ref[...] - (2.0 * lamh0) * gv0 + noise0

        # ------------- steps 1 .. n_steps-1: per-step learned networks -------
        def body(i, carry):
            v, x = carry
            j = i - 1
            lamh = lam * h_ref[i]
            noise = cn_ref[i] * xi_ref[i]                        # (batch, dim)

            # b1/b2 omitted: batch-constant bias cancels exactly in training-mode BN.
            a1 = bn_relu(jnp.dot(x, w1_ref[j], preferred_element_type=jnp.float32),
                         g1_ref[pl.ds(j, 1)], be1_ref[pl.ds(j, 1)])
            a2 = bn_relu(jnp.dot(a1, w2_ref[j], preferred_element_type=jnp.float32),
                         g2_ref[pl.ds(j, 1)], be2_ref[pl.ds(j, 1)])
            grad = (jnp.dot(a2, w3_ref[j], preferred_element_type=jnp.float32)
                    + b3_ref[pl.ds(j, 1)])

            # Fused v update: v += <grad, noise> - lam*h*||grad||^2 (one reduction).
            v = v + jnp.sum(grad * (noise - lamh * grad), axis=1, keepdims=True)
            # x update: x - 2*lam*h*grad + noise  (== x + 2*sqrt(lam)*h*alpha + noise)
            x = x - (2.0 * lamh) * grad + noise
            return (v, x)

        v, x = lax.fori_loop(1, n_steps, body, (v, x), unroll=unroll)
        v_out_ref[...] = v
        x_out_ref[...] = x

    return kernel


# --------------------------------------------------------------------------- #
# Wrapper
# --------------------------------------------------------------------------- #
def net_stacked_forward(params, x, xi_all, timegrid, lambda_, sigma):
    batch, dim = x.shape
    T = int(timegrid.shape[0])
    n_steps = T - 1
    n_layers = T - 2
    timegrid = timegrid.astype(jnp.float32)

    h_all = timegrid[1:] - timegrid[:-1]                 # (n_steps,)
    cn_all = (sigma * jnp.sqrt(h_all)).astype(jnp.float32)

    if n_layers == 0:
        # Trivial horizon: only the learned grad_v0 step exists.
        gv0 = params["grad_v0"].astype(jnp.float32)
        noise0 = cn_all[0] * xi_all[0]
        v = params["v0"][0] - lambda_ * jnp.sum(gv0 * gv0) * h_all[0] + noise0 @ gv0
        return v, x - (2.0 * lambda_ * h_all[0]) * gv0 + noise0

    hid = params["W1"].shape[-1]

    # 2-D per-step vectors (shared sublane padding across steps).
    g1 = params["g1"].reshape(n_layers, hid)
    be1 = params["be1"].reshape(n_layers, hid)
    g2 = params["g2"].reshape(n_layers, hid)
    be2 = params["be2"].reshape(n_layers, hid)
    b3 = params["b3"].reshape(n_layers, dim)
    gv0 = params["grad_v0"].reshape(1, dim).astype(jnp.float32)

    # ---- resident-VMEM guard (long horizons; v7x has only 64 MiB VMEM) -----
    vmem_shapes = [
        (1, dim), (batch, dim), (n_steps, batch, dim),
        (n_layers, dim, hid), (n_layers, hid), (n_layers, hid),
        (n_layers, hid, hid), (n_layers, hid), (n_layers, hid),
        (n_layers, hid, dim), (n_layers, dim),
        (batch, 1), (batch, dim),
    ]
    vmem_bytes = sum(_padded_vmem_bytes(s) for s in vmem_shapes)
    compiler_params = None
    if vmem_bytes > (24 << 20):
        # TODO(synk): beyond ~56 MiB switch to the chunked-grid streaming
        # variant (and bf16 storage on v6e/v7x) instead of raising the limit.
        compiler_params = pltpu.CompilerParams(
            vmem_limit_bytes=min(int(vmem_bytes * 1.25) + (2 << 20), 100 << 20))

    unroll = True if n_layers <= 16 else 8
    kernel = _make_kernel(lambda_, n_steps, unroll)

    smem = pl.BlockSpec(memory_space=pltpu.MemorySpace.SMEM)
    vmem = pl.BlockSpec(memory_space=pltpu.MemorySpace.VMEM)

    v_out, x_out = pl.pallas_call(
        kernel,
        out_shape=(jax.ShapeDtypeStruct((batch, 1), jnp.float32),
                   jax.ShapeDtypeStruct((batch, dim), jnp.float32)),
        in_specs=[smem, smem, smem] + [vmem] * 11,
        out_specs=(vmem, vmem),
        compiler_params=compiler_params,
    )(h_all, cn_all, params["v0"].astype(jnp.float32),
      gv0, x.astype(jnp.float32), xi_all.astype(jnp.float32),
      params["W1"], g1, be1,
      params["W2"], g2, be2,
      params["W3"], b3)
    return v_out[:, 0], x_out


# --------------------------------------------------------------------------- #
# Pure-JAX reference (mirrors the PyTorch forward, incl. b1/b2 biases)
# --------------------------------------------------------------------------- #
def reference_forward(params, x, xi_all, timegrid, lambda_, sigma, eps=1e-5):
    sqrt_lam = math.sqrt(lambda_)
    v = None
    for i in range(timegrid.shape[0] - 1):
        h = timegrid[i + 1] - timegrid[i]
        xi = xi_all[i]
        noise = sigma * jnp.sqrt(h) * xi
        if i == 0:
            alpha = -sqrt_lam * params["grad_v0"]
            f = jnp.sum(alpha ** 2)
            v = params["v0"][0] - f * h + noise @ params["grad_v0"]
        else:
            j = i - 1

            def bn_relu(y, g, b):
                m = jnp.mean(y, axis=0, keepdims=True)
                var = jnp.mean((y - m) ** 2, axis=0, keepdims=True)
                return jnp.maximum((y - m) * jax.lax.rsqrt(var + eps) * g + b, 0.0)

            h1 = bn_relu(x @ params["W1"][j] + params["b1"][j],
                         params["g1"][j], params["be1"][j])
            h2 = bn_relu(h1 @ params["W2"][j] + params["b2"][j],
                         params["g2"][j], params["be2"][j])
            grad = h2 @ params["W3"][j] + params["b3"][j]
            alpha = -sqrt_lam * grad
            f = jnp.sum(alpha ** 2, axis=1)
            v = v - f * h + jnp.sum(grad * noise, axis=1)
        x = x + 2.0 * sqrt_lam * alpha * h + noise
    return v, x


if __name__ == "__main__":
    key = jax.random.PRNGKey(0)
    dim, batch = 16, 8
    hid = dim + 10
    lambda_ = 1.0
    sigma = math.sqrt(2.0)
    timegrid = jnp.linspace(0.0, 1.0, 6).astype(jnp.float32)   # T = 6
    T = int(timegrid.shape[0])
    n_steps = T - 1
    n_layers = T - 2

    keys = jax.random.split(key, 12)

    def lin_init(k, shape, fan_in):
        bound = 1.0 / math.sqrt(fan_in)
        return jax.random.uniform(k, shape, jnp.float32, -bound, bound)

    params = {
        "v0": jax.random.normal(keys[0], (1,), jnp.float32),
        "grad_v0": jax.random.normal(keys[1], (dim,), jnp.float32),
        "W1": lin_init(keys[2], (n_layers, dim, hid), dim),
        "b1": lin_init(keys[3], (n_layers, 1, hid), dim),
        "g1": 1.0 + 0.1 * jax.random.normal(keys[10], (n_layers, 1, hid), jnp.float32),
        "be1": 0.1 * jax.random.normal(keys[11], (n_layers, 1, hid), jnp.float32),
        "W2": lin_init(keys[4], (n_layers, hid, hid), hid),
        "b2": lin_init(keys[5], (n_layers, 1, hid), hid),
        "g2": 1.0 + 0.1 * jax.random.normal(keys[10], (n_layers, 1, hid), jnp.float32),
        "be2": 0.1 * jax.random.normal(keys[11], (n_layers, 1, hid), jnp.float32),
        "W3": lin_init(keys[6], (n_layers, hid, dim), hid),
        "b3": lin_init(keys[7], (n_layers, 1, dim), hid),
    }
    x = jax.random.normal(keys[8], (batch, dim), jnp.float32)
    # xi = torch.randn(...) sampled inside forward -> generated deterministically here.
    xi_all = jax.random.normal(keys[9], (n_steps, batch, dim), jnp.float32)

    v, x_out = net_stacked_forward(params, x, xi_all, timegrid, lambda_, sigma)
    jax.block_until_ready((v, x_out))

    v_ref, x_ref = reference_forward(params, x, xi_all, timegrid, lambda_, sigma)
    assert v.shape == (batch,) and x_out.shape == (batch, dim)
    assert jnp.allclose(v, v_ref, atol=1e-4, rtol=1e-4), (v, v_ref)
    assert jnp.allclose(x_out, x_ref, atol=1e-4, rtol=1e-4)

    print("KERNEL_OK")
</pallas_src>

<mosaic_0001>
module attributes {stable_mosaic.version = 11 : i64} {
  func.func @kernel(%arg0: memref<5xf32, #tpu.memory_space<smem>>, %arg1: memref<5xf32, #tpu.memory_space<smem>>, %arg2: memref<1xf32, #tpu.memory_space<smem>>, %arg3: memref<1x16xf32, #tpu.memory_space<vmem>>, %arg4: memref<8x16xf32, #tpu.memory_space<vmem>>, %arg5: memref<5x8x16xf32, #tpu.memory_space<vmem>>, %arg6: memref<4x16x26xf32, #tpu.memory_space<vmem>>, %arg7: memref<4x26xf32, #tpu.memory_space<vmem>>, %arg8: memref<4x26xf32, #tpu.memory_space<vmem>>, %arg9: memref<4x26x26xf32, #tpu.memory_space<vmem>>, %arg10: memref<4x26xf32, #tpu.memory_space<vmem>>, %arg11: memref<4x26xf32, #tpu.memory_space<vmem>>, %arg12: memref<4x26x16xf32, #tpu.memory_space<vmem>>, %arg13: memref<4x16xf32, #tpu.memory_space<vmem>>, %arg14: memref<8x1xf32, #tpu.memory_space<vmem>>, %arg15: memref<8x16xf32, #tpu.memory_space<vmem>>) attributes {dimension_semantics = [], scalar_prefetch = 0 : i64, scratch_operands = 0 : i64, tpu.core_type = #tpu.core_type<tc>} {
    %c0 = arith.constant 0 : index
    %0 = memref.load %arg0[%c0] : memref<5xf32, #tpu.memory_space<smem>>
    %cst = arith.constant 1.000000e+00 : f32
    %1 = arith.mulf %cst, %0 : f32
    %c0_0 = arith.constant 0 : index
    %c0_1 = arith.constant 0 : index
    %2 = vector.load %arg3[%c0_0, %c0_1] : memref<1x16xf32, #tpu.memory_space<vmem>>, vector<1x16xf32>
    %c0_2 = arith.constant 0 : index
    %3 = memref.load %arg1[%c0_2] : memref<5xf32, #tpu.memory_space<smem>>
    %c0_3 = arith.constant 0 : index
    %c0_4 = arith.constant 0 : index
    %c0_5 = arith.constant 0 : index
    %4 = vector.load %arg5[%c0_3, %c0_4, %c0_5] : memref<5x8x16xf32, #tpu.memory_space<vmem>>, vector<1x8x16xf32>
    %5 = vector.shape_cast %4 : vector<1x8x16xf32> to vector<8x16xf32>
    %6 = vector.broadcast %3 : f32 to vector<8x16xf32>
    %7 = arith.mulf %6, %5 : vector<8x16xf32>
    %c0_6 = arith.constant 0 : index
    %8 = memref.load %arg2[%c0_6] : memref<1xf32, #tpu.memory_space<smem>>
    %9 = vector.broadcast %1 : f32 to vector<1x16xf32>
    %10 = arith.mulf %9, %2 : vector<1x16xf32>
    %11 = vector.broadcast %10 : vector<1x16xf32> to vector<8x16xf32>
    %12 = arith.subf %7, %11 : vector<8x16xf32>
    %13 = vector.broadcast %2 : vector<1x16xf32> to vector<8x16xf32>
    %14 = arith.mulf %13, %12 : vector<8x16xf32>
    %cst_7 = arith.constant dense<0.000000e+00> : vector<8xf32>
    %15 = vector.multi_reduction <add>, %14, %cst_7 [1] : vector<8x16xf32> to vector<8xf32>
    %16 = vector.shape_cast %15 : vector<8xf32> to vector<8x1xf32>
    %17 = vector.broadcast %8 : f32 to vector<8x1xf32>
    %18 = arith.addf %17, %16 : vector<8x1xf32>
    %c0_8 = arith.constant 0 : index
    %c0_9 = arith.constant 0 : index
    %19 = vector.load %arg4[%c0_8, %c0_9] : memref<8x16xf32, #tpu.memory_space<vmem>>, vector<8x16xf32>
    %cst_10 = arith.constant 2.000000e+00 : f32
    %20 = arith.mulf %cst_10, %1 : f32
    %21 = vector.broadcast %20 : f32 to vector<1x16xf32>
    %22 = arith.mulf %21, %2 : vector<1x16xf32>
    %23 = vector.broadcast %22 : vector<1x16xf32> to vector<8x16xf32>
    %24 = arith.subf %19, %23 : vector<8x16xf32>
    %25 = arith.addf %24, %7 : vector<8x16xf32>
    %c1_i32 = arith.constant 1 : i32
    %c1_i32_11 = arith.constant 1 : i32
    %26 = arith.subi %c1_i32, %c1_i32_11 : i32
    %27 = arith.index_cast %c1_i32 : i32 to index
    %28 = memref.load %arg0[%27] : memref<5xf32, #tpu.memory_space<smem>>
    %cst_12 = arith.constant 1.000000e+00 : f32
    %29 = arith.mulf %cst_12, %28 : f32
    %30 = arith.index_cast %c1_i32 : i32 to index
    %31 = memref.load %arg1[%30] : memref<5xf32, #tpu.memory_space<smem>>
    %32 = arith.index_cast %c1_i32 : i32 to index
    %c0_13 = arith.constant 0 : index
    %c0_14 = arith.constant 0 : index
    %33 = vector.load %arg5[%32, %c0_13, %c0_14] : memref<5x8x16xf32, #tpu.memory_space<vmem>>, vector<1x8x16xf32>
    %34 = vector.shape_cast %33 : vector<1x8x16xf32> to vector<8x16xf32>
    %35 = vector.broadcast %31 : f32 to vector<8x16xf32>
    %36 = arith.mulf %35, %34 : vector<8x16xf32>
    %37 = arith.index_cast %26 : i32 to index
    %c0_15 = arith.constant 0 : index
    %c0_16 = arith.constant 0 : index
    %38 = vector.load %arg6[%37, %c0_15, %c0_16] : memref<4x16x26xf32, #tpu.memory_space<vmem>>, vector<1x16x26xf32>
    %39 = vector.shape_cast %38 : vector<1x16x26xf32> to vector<16x26xf32>
    %cst_17 = arith.constant dense<0.000000e+00> : vector<8x26xf32>
    %40 = tpu.matmul %25, %39, %cst_17 {dimension_numbers = #tpu.dot_dimension_numbers<[1], [0], [0], [1], [0, 0, 1, 1], [], []>} : vector<8x16xf32>, vector<16x26xf32>, vector<8x26xf32> -> vector<8x26xf32>
    %41 = arith.index_cast %26 : i32 to index
    %c0_18 = arith.constant 0 : index
    %42 = vector.load %arg7[%41, %c0_18] : memref<4x26xf32, #tpu.memory_space<vmem>>, vector<1x26xf32>
    %43 = arith.index_cast %26 : i32 to index
    %c0_19 = arith.constant 0 : index
    %44 = vector.load %arg8[%43, %c0_19] : memref<4x26xf32, #tpu.memory_space<vmem>>, vector<1x26xf32>
    %cst_20 = arith.constant dense<0.000000e+00> : vector<26xf32>
    %45 = vector.multi_reduction <add>, %40, %cst_20 [0] : vector<8x26xf32> to vector<26xf32>
    %46 = vector.shape_cast %45 : vector<26xf32> to vector<1x26xf32>
    %cst_21 = arith.constant 8.000000e+00 : f32
    %47 = vector.broadcast %cst_21 : f32 to vector<1x26xf32>
    %48 = arith.divf %46, %47 : vector<1x26xf32>
    %49 = arith.mulf %40, %40 : vector<8x26xf32>
    %cst_22 = arith.constant dense<0.000000e+00> : vector<26xf32>
    %50 = vector.multi_reduction <add>, %49, %cst_22 [0] : vector<8x26xf32> to vector<26xf32>
    %51 = vector.shape_cast %50 : vector<26xf32> to vector<1x26xf32>
    %cst_23 = arith.constant 8.000000e+00 : f32
    %52 = vector.broadcast %cst_23 : f32 to vector<1x26xf32>
    %53 = arith.divf %51, %52 : vector<1x26xf32>
    %54 = arith.mulf %48, %48 : vector<1x26xf32>
    %55 = arith.subf %53, %54 : vector<1x26xf32>
    %56 = vector.broadcast %48 : vector<1x26xf32> to vector<8x26xf32>
    %57 = arith.subf %40, %56 : vector<8x26xf32>
    %cst_24 = arith.constant 9.99999974E-6 : f32
    %58 = vector.broadcast %cst_24 : f32 to vector<1x26xf32>
    %59 = arith.addf %55, %58 : vector<1x26xf32>
    %60 = math.rsqrt %59 : vector<1x26xf32>
    %61 = vector.broadcast %60 : vector<1x26xf32> to vector<8x26xf32>
    %62 = arith.mulf %57, %61 : vector<8x26xf32>
    %63 = vector.broadcast %42 : vector<1x26xf32> to vector<8x26xf32>
    %64 = arith.mulf %62, %63 : vector<8x26xf32>
    %65 = vector.broadcast %44 : vector<1x26xf32> to vector<8x26xf32>
    %66 = arith.addf %64, %65 : vector<8x26xf32>
    %cst_25 = arith.constant 0.000000e+00 : f32
    %67 = vector.broadcast %cst_25 : f32 to vector<8x26xf32>
    %68 = arith.maximumf %66, %67 : vector<8x26xf32>
    %69 = arith.index_cast %26 : i32 to index
    %c0_26 = arith.constant 0 : index
    %c0_27 = arith.constant 0 : index
    %70 = vector.load %arg9[%69, %c0_26, %c0_27] : memref<4x26x26xf32, #tpu.memory_space<vmem>>, vector<1x26x26xf32>
    %71 = vector.shape_cast %70 : vector<1x26x26xf32> to vector<26x26xf32>
    %cst_28 = arith.constant dense<0.000000e+00> : vector<8x26xf32>
    %72 = tpu.matmul %68, %71, %cst_28 {dimension_numbers = #tpu.dot_dimension_numbers<[1], [0], [0], [1], [0, 0, 1, 1], [], []>} : vector<8x26xf32>, vector<26x26xf32>, vector<8x26xf32> -> vector<8x26xf32>
    %73 = arith.index_cast %26 : i32 to index
    %c0_29 = arith.constant 0 : index
    %74 = vector.load %arg10[%73, %c0_29] : memref<4x26xf32, #tpu.memory_space<vmem>>, vector<1x26xf32>
    %75 = arith.index_cast %26 : i32 to index
    %c0_30 = arith.constant 0 : index
    %76 = vector.load %arg11[%75, %c0_30] : memref<4x26xf32, #tpu.memory_space<vmem>>, vector<1x26xf32>
    %cst_31 = arith.constant dense<0.000000e+00> : vector<26xf32>
    %77 = vector.multi_reduction <add>, %72, %cst_31 [0] : vector<8x26xf32> to vector<26xf32>
    %78 = vector.shape_cast %77 : vector<26xf32> to vector<1x26xf32>
    %cst_32 = arith.constant 8.000000e+00 : f32
    %79 = vector.broadcast %cst_32 : f32 to vector<1x26xf32>
    %80 = arith.divf %78, %79 : vector<1x26xf32>
    %81 = arith.mulf %72, %72 : vector<8x26xf32>
    %cst_33 = arith.constant dense<0.000000e+00> : vector<26xf32>
    %82 = vector.multi_reduction <add>, %81, %cst_33 [0] : vector<8x26xf32> to vector<26xf32>
    %83 = vector.shape_cast %82 : vector<26xf32> to vector<1x26xf32>
    %cst_34 = arith.constant 8.000000e+00 : f32
    %84 = vector.broadcast %cst_34 : f32 to vector<1x26xf32>
    %85 = arith.divf %83, %84 : vector<1x26xf32>
    %86 = arith.mulf %80, %80 : vector<1x26xf32>
    %87 = arith.subf %85, %86 : vector<1x26xf32>
    %88 = vector.broadcast %80 : vector<1x26xf32> to vector<8x26xf32>
    %89 = arith.subf %72, %88 : vector<8x26xf32>
    %cst_35 = arith.constant 9.99999974E-6 : f32
    %90 = vector.broadcast %cst_35 : f32 to vector<1x26xf32>
    %91 = arith.addf %87, %90 : vector<1x26xf32>
    %92 = math.rsqrt %91 : vector<1x26xf32>
    %93 = vector.broadcast %92 : vector<1x26xf32> to vector<8x26xf32>
    %94 = arith.mulf %89, %93 : vector<8x26xf32>
    %95 = vector.broadcast %74 : vector<1x26xf32> to vector<8x26xf32>
    %96 = arith.mulf %94, %95 : vector<8x26xf32>
    %97 = vector.broadcast %76 : vector<1x26xf32> to vector<8x26xf32>
    %98 = arith.addf %96, %97 : vector<8x26xf32>
    %cst_36 = arith.constant 0.000000e+00 : f32
    %99 = vector.broadcast %cst_36 : f32 to vector<8x26xf32>
    %100 = arith.maximumf %98, %99 : vector<8x26xf32>
    %101 = arith.index_cast %26 : i32 to index
    %c0_37 = arith.constant 0 : index
    %c0_38 = arith.constant 0 : index
    %102 = vector.load %arg12[%101, %c0_37, %c0_38] : memref<4x26x16xf32, #tpu.memory_space<vmem>>, vector<1x26x16xf32>
    %103 = vector.shape_cast %102 : vector<1x26x16xf32> to vector<26x16xf32>
    %cst_39 = arith.constant dense<0.000000e+00> : vector<8x16xf32>
    %104 = tpu.matmul %100, %103, %cst_39 {dimension_numbers = #tpu.dot_dimension_numbers<[1], [0], [0], [1], [0, 0, 1, 1], [], []>} : vector<8x26xf32>, vector<26x16xf32>, vector<8x16xf32> -> vector<8x16xf32>
    %105 = arith.index_cast %26 : i32 to index
    %c0_40 = arith.constant 0 : index
    %106 = vector.load %arg13[%105, %c0_40] : memref<4x16xf32, #tpu.memory_space<vmem>>, vector<1x16xf32>
    %107 = vector.broadcast %106 : vector<1x16xf32> to vector<8x16xf32>
    %108 = arith.addf %104, %107 : vector<8x16xf32>
    %109 = vector.broadcast %29 : f32 to vector<8x16xf32>
    %110 = arith.mulf %109, %108 : vector<8x16xf32>
    %111 = arith.subf %36, %110 : vector<8x16xf32>
    %112 = arith.mulf %108, %111 : vector<8x16xf32>
    %cst_41 = arith.constant dense<0.000000e+00> : vector<8xf32>
    %113 = vector.multi_reduction <add>, %112, %cst_41 [1] : vector<8x16xf32> to vector<8xf32>
    %114 = vector.shape_cast %113 : vector<8xf32> to vector<8x1xf32>
    %115 = arith.addf %18, %114 : vector<8x1xf32>
    %cst_42 = arith.constant 2.000000e+00 : f32
    %116 = arith.mulf %cst_42, %29 : f32
    %117 = vector.broadcast %116 : f32 to vector<8x16xf32>
    %118 = arith.mulf %117, %108 : vector<8x16xf32>
    %119 = arith.subf %25, %118 : vector<8x16xf32>
    %120 = arith.addf %119, %36 : vector<8x16xf32>
    %c2_i32 = arith.constant 2 : i32
    %c1_i32_43 = arith.constant 1 : i32
    %121 = arith.subi %c2_i32, %c1_i32_43 : i32
    %122 = arith.index_cast %c2_i32 : i32 to index
    %123 = memref.load %arg0[%122] : memref<5xf32, #tpu.memory_space<smem>>
    %cst_44 = arith.constant 1.000000e+00 : f32
    %124 = arith.mulf %cst_44, %123 : f32
    %125 = arith.index_cast %c2_i32 : i32 to index
    %126 = memref.load %arg1[%125] : memref<5xf32, #tpu.memory_space<smem>>
    %127 = arith.index_cast %c2_i32 : i32 to index
    %c0_45 = arith.constant 0 : index
    %c0_46 = arith.constant 0 : index
    %128 = vector.load %arg5[%127, %c0_45, %c0_46] : memref<5x8x16xf32, #tpu.memory_space<vmem>>, vector<1x8x16xf32>
    %129 = vector.shape_cast %128 : vector<1x8x16xf32> to vector<8x16xf32>
    %130 = vector.broadcast %126 : f32 to vector<8x16xf32>
    %131 = arith.mulf %130, %129 : vector<8x16xf32>
    %132 = arith.index_cast %121 : i32 to index
    %c0_47 = arith.constant 0 : index
    %c0_48 = arith.constant 0 : index
    %133 = vector.load %arg6[%132, %c0_47, %c0_48] : memref<4x16x26xf32, #tpu.memory_space<vmem>>, vector<1x16x26xf32>
    %134 = vector.shape_cast %133 : vector<1x16x26xf32> to vector<16x26xf32>
    %cst_49 = arith.constant dense<0.000000e+00> : vector<8x26xf32>
    %135 = tpu.matmul %120, %134, %cst_49 {dimension_numbers = #tpu.dot_dimension_numbers<[1], [0], [0], [1], [0, 0, 1, 1], [], []>} : vector<8x16xf32>, vector<16x26xf32>, vector<8x26xf32> -> vector<8x26xf32>
    %136 = arith.index_cast %121 : i32 to index
    %c0_50 = arith.constant 0 : index
    %137 = vector.load %arg7[%136, %c0_50] : memref<4x26xf32, #tpu.memory_space<vmem>>, vector<1x26xf32>
    %138 = arith.index_cast %121 : i32 to index
    %c0_51 = arith.constant 0 : index
    %139 = vector.load %arg8[%138, %c0_51] : memref<4x26xf32, #tpu.memory_space<vmem>>, vector<1x26xf32>
    %cst_52 = arith.constant dense<0.000000e+00> : vector<26xf32>
    %140 = vector.multi_reduction <add>, %135, %cst_52 [0] : vector<8x26xf32> to vector<26xf32>
    %141 = vector.shape_cast %140 : vector<26xf32> to vector<1x26xf32>
    %cst_53 = arith.constant 8.000000e+00 : f32
    %142 = vector.broadcast %cst_53 : f32 to vector<1x26xf32>
    %143 = arith.divf %141, %142 : vector<1x26xf32>
    %144 = arith.mulf %135, %135 : vector<8x26xf32>
    %cst_54 = arith.constant dense<0.000000e+00> : vector<26xf32>
    %145 = vector.multi_reduction <add>, %144, %cst_54 [0] : vector<8x26xf32> to vector<26xf32>
    %146 = vector.shape_cast %145 : vector<26xf32> to vector<1x26xf32>
    %cst_55 = arith.constant 8.000000e+00 : f32
    %147 = vector.broadcast %cst_55 : f32 to vector<1x26xf32>
    %148 = arith.divf %146, %147 : vector<1x26xf32>
    %149 = arith.mulf %143, %143 : vector<1x26xf32>
    %150 = arith.subf %148, %149 : vector<1x26xf32>
    %151 = vector.broadcast %143 : vector<1x26xf32> to vector<8x26xf32>
    %152 = arith.subf %135, %151 : vector<8x26xf32>
    %cst_56 = arith.constant 9.99999974E-6 : f32
    %153 = vector.broadcast %cst_56 : f32 to vector<1x26xf32>
    %154 = arith.addf %150, %153 : vector<1x26xf32>
    %155 = math.rsqrt %154 : vector<1x26xf32>
    %156 = vector.broadcast %155 : vector<1x26xf32> to vector<8x26xf32>
    %157 = arith.mulf %152, %156 : vector<8x26xf32>
    %158 = vector.broadcast %137 : vector<1x26xf32> to vector<8x26xf32>
    %159 = arith.mulf %157, %158 : vector<8x26xf32>
    %160 = vector.broadcast %139 : vector<1x26xf32> to vector<8x26xf32>
    %161 = arith.addf %159, %160 : vector<8x26xf32>
    %cst_57 = arith.constant 0.000000e+00 : f32
    %162 = vector.broadcast %cst_57 : f32 to vector<8x26xf32>
    %163 = arith.maximumf %161, %162 : vector<8x26xf32>
    %164 = arith.index_cast %121 : i32 to index
    %c0_58 = arith.constant 0 : index
    %c0_59 = arith.constant 0 : index
    %165 = vector.load %arg9[%164, %c0_58, %c0_59] : memref<4x26x26xf32, #tpu.memory_space<vmem>>, vector<1x26x26xf32>
    %166 = vector.shape_cast %165 : vector<1x26x26xf32> to vector<26x26xf32>
    %cst_60 = arith.constant dense<0.000000e+00> : vector<8x26xf32>
    %167 = tpu.matmul %163, %166, %cst_60 {dimension_numbers = #tpu.dot_dimension_numbers<[1], [0], [0], [1], [0, 0, 1, 1], [], []>} : vector<8x26xf32>, vector<26x26xf32>, vector<8x26xf32> -> vector<8x26xf32>
    %168 = arith.index_cast %121 : i32 to index
    %c0_61 = arith.constant 0 : index
    %169 = vector.load %arg10[%168, %c0_61] : memref<4x26xf32, #tpu.memory_space<vmem>>, vector<1x26xf32>
    %170 = arith.index_cast %121 : i32 to index
    %c0_62 = arith.constant 0 : index
    %171 = vector.load %arg11[%170, %c0_62] : memref<4x26xf32, #tpu.memory_space<vmem>>, vector<1x26xf32>
    %cst_63 = arith.constant dense<0.000000e+00> : vector<26xf32>
    %172 = vector.multi_reduction <add>, %167, %cst_63 [0] : vector<8x26xf32> to vector<26xf32>
    %173 = vector.shape_cast %172 : vector<26xf32> to vector<1x26xf32>
    %cst_64 = arith.constant 8.000000e+00 : f32
    %174 = vector.broadcast %cst_64 : f32 to vector<1x26xf32>
    %175 = arith.divf %173, %174 : vector<1x26xf32>
    %176 = arith.mulf %167, %167 : vector<8x26xf32>
    %cst_65 = arith.constant dense<0.000000e+00> : vector<26xf32>
    %177 = vector.multi_reduction <add>, %176, %cst_65 [0] : vector<8x26xf32> to vector<26xf32>
    %178 = vector.shape_cast %177 : vector<26xf32> to vector<1x26xf32>
    %cst_66 = arith.constant 8.000000e+00 : f32
    %179 = vector.broadcast %cst_66 : f32 to vector<1x26xf32>
    %180 = arith.divf %178, %179 : vector<1x26xf32>
    %181 = arith.mulf %175, %175 : vector<1x26xf32>
    %182 = arith.subf %180, %181 : vector<1x26xf32>
    %183 = vector.broadcast %175 : vector<1x26xf32> to vector<8x26xf32>
    %184 = arith.subf %167, %183 : vector<8x26xf32>
    %cst_67 = arith.constant 9.99999974E-6 : f32
    %185 = vector.broadcast %cst_67 : f32 to vector<1x26xf32>
    %186 = arith.addf %182, %185 : vector<1x26xf32>
    %187 = math.rsqrt %186 : vector<1x26xf32>
    %188 = vector.broadcast %187 : vector<1x26xf32> to vector<8x26xf32>
    %189 = arith.mulf %184, %188 : vector<8x26xf32>
    %190 = vector.broadcast %169 : vector<1x26xf32> to vector<8x26xf32>
    %191 = arith.mulf %189, %190 : vector<8x26xf32>
    %192 = vector.broadcast %171 : vector<1x26xf32> to vector<8x26xf32>
    %193 = arith.addf %191, %192 : vector<8x26xf32>
    %cst_68 = arith.constant 0.000000e+00 : f32
    %194 = vector.broadcast %cst_68 : f32 to vector<8x26xf32>
    %195 = arith.maximumf %193, %194 : vector<8x26xf32>
    %196 = arith.index_cast %121 : i32 to index
    %c0_69 = arith.constant 0 : index
    %c0_70 = arith.constant 0 : index
    %197 = vector.load %arg12[%196, %c0_69, %c0_70] : memref<4x26x16xf32, #tpu.memory_space<vmem>>, vector<1x26x16xf32>
    %198 = vector.shape_cast %197 : vector<1x26x16xf32> to vector<26x16xf32>
    %cst_71 = arith.constant dense<0.000000e+00> : vector<8x16xf32>
    %199 = tpu.matmul %195, %198, %cst_71 {dimension_numbers = #tpu.dot_dimension_numbers<[1], [0], [0], [1], [0, 0, 1, 1], [], []>} : vector<8x26xf32>, vector<26x16xf32>, vector<8x16xf32> -> vector<8x16xf32>
    %200 = arith.index_cast %121 : i32 to index
    %c0_72 = arith.constant 0 : index
    %201 = vector.load %arg13[%200, %c0_72] : memref<4x16xf32, #tpu.memory_space<vmem>>, vector<1x16xf32>
    %202 = vector.broadcast %201 : vector<1x16xf32> to vector<8x16xf32>
    %203 = arith.addf %199, %202 : vector<8x16xf32>
    %204 = vector.broadcast %124 : f32 to vector<8x16xf32>
    %205 = arith.mulf %204, %203 : vector<8x16xf32>
    %206 = arith.subf %131, %205 : vector<8x16xf32>
    %207 = arith.mulf %203, %206 : vector<8x16xf32>
    %cst_73 = arith.constant dense<0.000000e+00> : vector<8xf32>
    %208 = vector.multi_reduction <add>, %207, %cst_73 [1] : vector<8x16xf32> to vector<8xf32>
    %209 = vector.shape_cast %208 : vector<8xf32> to vector<8x1xf32>
    %210 = arith.addf %115, %209 : vector<8x1xf32>
    %cst_74 = arith.constant 2.000000e+00 : f32
    %211 = arith.mulf %cst_74, %124 : f32
    %212 = vector.broadcast %211 : f32 to vector<8x16xf32>
    %213 = arith.mulf %212, %203 : vector<8x16xf32>
    %214 = arith.subf %120, %213 : vector<8x16xf32>
    %215 = arith.addf %214, %131 : vector<8x16xf32>
    %c3_i32 = arith.constant 3 : i32
    %c1_i32_75 = arith.constant 1 : i32
    %216 = arith.subi %c3_i32, %c1_i32_75 : i32
    %217 = arith.index_cast %c3_i32 : i32 to index
    %218 = memref.load %arg0[%217] : memref<5xf32, #tpu.memory_space<smem>>
    %cst_76 = arith.constant 1.000000e+00 : f32
    %219 = arith.mulf %cst_76, %218 : f32
    %220 = arith.index_cast %c3_i32 : i32 to index
    %221 = memref.load %arg1[%220] : memref<5xf32, #tpu.memory_space<smem>>
    %222 = arith.index_cast %c3_i32 : i32 to index
    %c0_77 = arith.constant 0 : index
    %c0_78 = arith.constant 0 : index
    %223 = vector.load %arg5[%222, %c0_77, %c0_78] : memref<5x8x16xf32, #tpu.memory_space<vmem>>, vector<1x8x16xf32>
    %224 = vector.shape_cast %223 : vector<1x8x16xf32> to vector<8x16xf32>
    %225 = vector.broadcast %221 : f32 to vector<8x16xf32>
    %226 = arith.mulf %225, %224 : vector<8x16xf32>
    %227 = arith.index_cast %216 : i32 to index
    %c0_79 = arith.constant 0 : index
    %c0_80 = arith.constant 0 : index
    %228 = vector.load %arg6[%227, %c0_79, %c0_80] : memref<4x16x26xf32, #tpu.memory_space<vmem>>, vector<1x16x26xf32>
    %229 = vector.shape_cast %228 : vector<1x16x26xf32> to vector<16x26xf32>
    %cst_81 = arith.constant dense<0.000000e+00> : vector<8x26xf32>
    %230 = tpu.matmul %215, %229, %cst_81 {dimension_numbers = #tpu.dot_dimension_numbers<[1], [0], [0], [1], [0, 0, 1, 1], [], []>} : vector<8x16xf32>, vector<16x26xf32>, vector<8x26xf32> -> vector<8x26xf32>
    %231 = arith.index_cast %216 : i32 to index
    %c0_82 = arith.constant 0 : index
    %232 = vector.load %arg7[%231, %c0_82] : memref<4x26xf32, #tpu.memory_space<vmem>>, vector<1x26xf32>
    %233 = arith.index_cast %216 : i32 to index
    %c0_83 = arith.constant 0 : index
    %234 = vector.load %arg8[%233, %c0_83] : memref<4x26xf32, #tpu.memory_space<vmem>>, vector<1x26xf32>
    %cst_84 = arith.constant dense<0.000000e+00> : vector<26xf32>
    %235 = vector.multi_reduction <add>, %230, %cst_84 [0] : vector<8x26xf32> to vector<26xf32>
    %236 = vector.shape_cast %235 : vector<26xf32> to vector<1x26xf32>
    %cst_85 = arith.constant 8.000000e+00 : f32
    %237 = vector.broadcast %cst_85 : f32 to vector<1x26xf32>
    %238 = arith.divf %236, %237 : vector<1x26xf32>
    %239 = arith.mulf %230, %230 : vector<8x26xf32>
    %cst_86 = arith.constant dense<0.000000e+00> : vector<26xf32>
    %240 = vector.multi_reduction <add>, %239, %cst_86 [0] : vector<8x26xf32> to vector<26xf32>
    %241 = vector.shape_cast %240 : vector<26xf32> to vector<1x26xf32>
    %cst_87 = arith.constant 8.000000e+00 : f32
    %242 = vector.broadcast %cst_87 : f32 to vector<1x26xf32>
    %243 = arith.divf %241, %242 : vector<1x26xf32>
    %244 = arith.mulf %238, %238 : vector<1x26xf32>
    %245 = arith.subf %243, %244 : vector<1x26xf32>
    %246 = vector.broadcast %238 : vector<1x26xf32> to vector<8x26xf32>
    %247 = arith.subf %230, %246 : vector<8x26xf32>
    %cst_88 = arith.constant 9.99999974E-6 : f32
    %248 = vector.broadcast %cst_88 : f32 to vector<1x26xf32>
    %249 = arith.addf %245, %248 : vector<1x26xf32>
    %250 = math.rsqrt %249 : vector<1x26xf32>
    %251 = vector.broadcast %250 : vector<1x26xf32> to vector<8x26xf32>
    %252 = arith.mulf %247, %251 : vector<8x26xf32>
    %253 = vector.broadcast %232 : vector<1x26xf32> to vector<8x26xf32>
    %254 = arith.mulf %252, %253 : vector<8x26xf32>
    %255 = vector.broadcast %234 : vector<1x26xf32> to vector<8x26xf32>
    %256 = arith.addf %254, %255 : vector<8x26xf32>
    %cst_89 = arith.constant 0.000000e+00 : f32
    %257 = vector.broadcast %cst_89 : f32 to vector<8x26xf32>
    %258 = arith.maximumf %256, %257 : vector<8x26xf32>
    %259 = arith.index_cast %216 : i32 to index
    %c0_90 = arith.constant 0 : index
    %c0_91 = arith.constant 0 : index
    %260 = vector.load %arg9[%259, %c0_90, %c0_91] : memref<4x26x26xf32, #tpu.memory_space<vmem>>, vector<1x26x26xf32>
    %261 = vector.shape_cast %260 : vector<1x26x26xf32> to vector<26x26xf32>
    %cst_92 = arith.constant dense<0.000000e+00> : vector<8x26xf32>
    %262 = tpu.matmul %258, %261, %cst_92 {dimension_numbers = #tpu.dot_dimension_numbers<[1], [0], [0], [1], [0, 0, 1, 1], [], []>} : vector<8x26xf32>, vector<26x26xf32>, vector<8x26xf32> -> vector<8x26xf32>
    %263 = arith.index_cast %216 : i32 to index
    %c0_93 = arith.constant 0 : index
    %264 = vector.load %arg10[%263, %c0_93] : memref<4x26xf32, #tpu.memory_space<vmem>>, vector<1x26xf32>
    %265 = arith.index_cast %216 : i32 to index
    %c0_94 = arith.constant 0 : index
    %266 = vector.load %arg11[%265, %c0_94] : memref<4x26xf32, #tpu.memory_space<vmem>>, vector<1x26xf32>
    %cst_95 = arith.constant dense<0.000000e+00> : vector<26xf32>
    %267 = vector.multi_reduction <add>, %262, %cst_95 [0] : vector<8x26xf32> to vector<26xf32>
    %268 = vector.shape_cast %267 : vector<26xf32> to vector<1x26xf32>
    %cst_96 = arith.constant 8.000000e+00 : f32
    %269 = vector.broadcast %cst_96 : f32 to vector<1x26xf32>
    %270 = arith.divf %268, %269 : vector<1x26xf32>
    %271 = arith.mulf %262, %262 : vector<8x26xf32>
    %cst_97 = arith.constant dense<0.000000e+00> : vector<26xf32>
    %272 = vector.multi_reduction <add>, %271, %cst_97 [0] : vector<8x26xf32> to vector<26xf32>
    %273 = vector.shape_cast %272 : vector<26xf32> to vector<1x26xf32>
    %cst_98 = arith.constant 8.000000e+00 : f32
    %274 = vector.broadcast %cst_98 : f32 to vector<1x26xf32>
    %275 = arith.divf %273, %274 : vector<1x26xf32>
    %276 = arith.mulf %270, %270 : vector<1x26xf32>
    %277 = arith.subf %275, %276 : vector<1x26xf32>
    %278 = vector.broadcast %270 : vector<1x26xf32> to vector<8x26xf32>
    %279 = arith.subf %262, %278 : vector<8x26xf32>
    %cst_99 = arith.constant 9.99999974E-6 : f32
    %280 = vector.broadcast %cst_99 : f32 to vector<1x26xf32>
    %281 = arith.addf %277, %280 : vector<1x26xf32>
    %282 = math.rsqrt %281 : vector<1x26xf32>
    %283 = vector.broadcast %282 : vector<1x26xf32> to vector<8x26xf32>
    %284 = arith.mulf %279, %283 : vector<8x26xf32>
    %285 = vector.broadcast %264 : vector<1x26xf32> to vector<8x26xf32>
    %286 = arith.mulf %284, %285 : vector<8x26xf32>
    %287 = vector.broadcast %266 : vector<1x26xf32> to vector<8x26xf32>
    %288 = arith.addf %286, %287 : vector<8x26xf32>
    %cst_100 = arith.constant 0.000000e+00 : f32
    %289 = vector.broadcast %cst_100 : f32 to vector<8x26xf32>
    %290 = arith.maximumf %288, %289 : vector<8x26xf32>
    %291 = arith.index_cast %216 : i32 to index
    %c0_101 = arith.constant 0 : index
    %c0_102 = arith.constant 0 : index
    %292 = vector.load %arg12[%291, %c0_101, %c0_102] : memref<4x26x16xf32, #tpu.memory_space<vmem>>, vector<1x26x16xf32>
    %293 = vector.shape_cast %292 : vector<1x26x16xf32> to vector<26x16xf32>
    %cst_103 = arith.constant dense<0.000000e+00> : vector<8x16xf32>
    %294 = tpu.matmul %290, %293, %cst_103 {dimension_numbers = #tpu.dot_dimension_numbers<[1], [0], [0], [1], [0, 0, 1, 1], [], []>} : vector<8x26xf32>, vector<26x16xf32>, vector<8x16xf32> -> vector<8x16xf32>
    %295 = arith.index_cast %216 : i32 to index
    %c0_104 = arith.constant 0 : index
    %296 = vector.load %arg13[%295, %c0_104] : memref<4x16xf32, #tpu.memory_space<vmem>>, vector<1x16xf32>
    %297 = vector.broadcast %296 : vector<1x16xf32> to vector<8x16xf32>
    %298 = arith.addf %294, %297 : vector<8x16xf32>
    %299 = vector.broadcast %219 : f32 to vector<8x16xf32>
    %300 = arith.mulf %299, %298 : vector<8x16xf32>
    %301 = arith.subf %226, %300 : vector<8x16xf32>
    %302 = arith.mulf %298, %301 : vector<8x16xf32>
    %cst_105 = arith.constant dense<0.000000e+00> : vector<8xf32>
    %303 = vector.multi_reduction <add>, %302, %cst_105 [1] : vector<8x16xf32> to vector<8xf32>
    %304 = vector.shape_cast %303 : vector<8xf32> to vector<8x1xf32>
    %305 = arith.addf %210, %304 : vector<8x1xf32>
    %cst_106 = arith.constant 2.000000e+00 : f32
    %306 = arith.mulf %cst_106, %219 : f32
    %307 = vector.broadcast %306 : f32 to vector<8x16xf32>
    %308 = arith.mulf %307, %298 : vector<8x16xf32>
    %309 = arith.subf %215, %308 : vector<8x16xf32>
    %310 = arith.addf %309, %226 : vector<8x16xf32>
    %c4_i32 = arith.constant 4 : i32
    %c1_i32_107 = arith.constant 1 : i32
    %311 = arith.subi %c4_i32, %c1_i32_107 : i32
    %312 = arith.index_cast %c4_i32 : i32 to index
    %313 = memref.load %arg0[%312] : memref<5xf32, #tpu.memory_space<smem>>
    %cst_108 = arith.constant 1.000000e+00 : f32
    %314 = arith.mulf %cst_108, %313 : f32
    %315 = arith.index_cast %c4_i32 : i32 to index
    %316 = memref.load %arg1[%315] : memref<5xf32, #tpu.memory_space<smem>>
    %317 = arith.index_cast %c4_i32 : i32 to index
    %c0_109 = arith.constant 0 : index
    %c0_110 = arith.constant 0 : index
    %318 = vector.load %arg5[%317, %c0_109, %c0_110] : memref<5x8x16xf32, #tpu.memory_space<vmem>>, vector<1x8x16xf32>
    %319 = vector.shape_cast %318 : vector<1x8x16xf32> to vector<8x16xf32>
    %320 = vector.broadcast %316 : f32 to vector<8x16xf32>
    %321 = arith.mulf %320, %319 : vector<8x16xf32>
    %322 = arith.index_cast %311 : i32 to index
    %c0_111 = arith.constant 0 : index
    %c0_112 = arith.constant 0 : index
    %323 = vector.load %arg6[%322, %c0_111, %c0_112] : memref<4x16x26xf32, #tpu.memory_space<vmem>>, vector<1x16x26xf32>
    %324 = vector.shape_cast %323 : vector<1x16x26xf32> to vector<16x26xf32>
    %cst_113 = arith.constant dense<0.000000e+00> : vector<8x26xf32>
    %325 = tpu.matmul %310, %324, %cst_113 {dimension_numbers = #tpu.dot_dimension_numbers<[1], [0], [0], [1], [0, 0, 1, 1], [], []>} : vector<8x16xf32>, vector<16x26xf32>, vector<8x26xf32> -> vector<8x26xf32>
    %326 = arith.index_cast %311 : i32 to index
    %c0_114 = arith.constant 0 : index
    %327 = vector.load %arg7[%326, %c0_114] : memref<4x26xf32, #tpu.memory_space<vmem>>, vector<1x26xf32>
    %328 = arith.index_cast %311 : i32 to index
    %c0_115 = arith.constant 0 : index
    %329 = vector.load %arg8[%328, %c0_115] : memref<4x26xf32, #tpu.memory_space<vmem>>, vector<1x26xf32>
    %cst_116 = arith.constant dense<0.000000e+00> : vector<26xf32>
    %330 = vector.multi_reduction <add>, %325, %cst_116 [0] : vector<8x26xf32> to vector<26xf32>
    %331 = vector.shape_cast %330 : vector<26xf32> to vector<1x26xf32>
    %cst_117 = arith.constant 8.000000e+00 : f32
    %332 = vector.broadcast %cst_117 : f32 to vector<1x26xf32>
    %333 = arith.divf %331, %332 : vector<1x26xf32>
    %334 = arith.mulf %325, %325 : vector<8x26xf32>
    %cst_118 = arith.constant dense<0.000000e+00> : vector<26xf32>
    %335 = vector.multi_reduction <add>, %334, %cst_118 [0] : vector<8x26xf32> to vector<26xf32>
    %336 = vector.shape_cast %335 : vector<26xf32> to vector<1x26xf32>
    %cst_119 = arith.constant 8.000000e+00 : f32
    %337 = vector.broadcast %cst_119 : f32 to vector<1x26xf32>
    %338 = arith.divf %336, %337 : vector<1x26xf32>
    %339 = arith.mulf %333, %333 : vector<1x26xf32>
    %340 = arith.subf %338, %339 : vector<1x26xf32>
    %341 = vector.broadcast %333 : vector<1x26xf32> to vector<8x26xf32>
    %342 = arith.subf %325, %341 : vector<8x26xf32>
    %cst_120 = arith.constant 9.99999974E-6 : f32
    %343 = vector.broadcast %cst_120 : f32 to vector<1x26xf32>
    %344 = arith.addf %340, %343 : vector<1x26xf32>
    %345 = math.rsqrt %344 : vector<1x26xf32>
    %346 = vector.broadcast %345 : vector<1x26xf32> to vector<8x26xf32>
    %347 = arith.mulf %342, %346 : vector<8x26xf32>
    %348 = vector.broadcast %327 : vector<1x26xf32> to vector<8x26xf32>
    %349 = arith.mulf %347, %348 : vector<8x26xf32>
    %350 = vector.broadcast %329 : vector<1x26xf32> to vector<8x26xf32>
    %351 = arith.addf %349, %350 : vector<8x26xf32>
    %cst_121 = arith.constant 0.000000e+00 : f32
    %352 = vector.broadcast %cst_121 : f32 to vector<8x26xf32>
    %353 = arith.maximumf %351, %352 : vector<8x26xf32>
    %354 = arith.index_cast %311 : i32 to index
    %c0_122 = arith.constant 0 : index
    %c0_123 = arith.constant 0 : index
    %355 = vector.load %arg9[%354, %c0_122, %c0_123] : memref<4x26x26xf32, #tpu.memory_space<vmem>>, vector<1x26x26xf32>
    %356 = vector.shape_cast %355 : vector<1x26x26xf32> to vector<26x26xf32>
    %cst_124 = arith.constant dense<0.000000e+00> : vector<8x26xf32>
    %357 = tpu.matmul %353, %356, %cst_124 {dimension_numbers = #tpu.dot_dimension_numbers<[1], [0], [0], [1], [0, 0, 1, 1], [], []>} : vector<8x26xf32>, vector<26x26xf32>, vector<8x26xf32> -> vector<8x26xf32>
    %358 = arith.index_cast %311 : i32 to index
    %c0_125 = arith.constant 0 : index
    %359 = vector.load %arg10[%358, %c0_125] : memref<4x26xf32, #tpu.memory_space<vmem>>, vector<1x26xf32>
    %360 = arith.index_cast %311 : i32 to index
    %c0_126 = arith.constant 0 : index
    %361 = vector.load %arg11[%360, %c0_126] : memref<4x26xf32, #tpu.memory_space<vmem>>, vector<1x26xf32>
    %cst_127 = arith.constant dense<0.000000e+00> : vector<26xf32>
    %362 = vector.multi_reduction <add>, %357, %cst_127 [0] : vector<8x26xf32> to vector<26xf32>
    %363 = vector.shape_cast %362 : vector<26xf32> to vector<1x26xf32>
    %cst_128 = arith.constant 8.000000e+00 : f32
    %364 = vector.broadcast %cst_128 : f32 to vector<1x26xf32>
    %365 = arith.divf %363, %364 : vector<1x26xf32>
    %366 = arith.mulf %357, %357 : vector<8x26xf32>
    %cst_129 = arith.constant dense<0.000000e+00> : vector<26xf32>
    %367 = vector.multi_reduction <add>, %366, %cst_129 [0] : vector<8x26xf32> to vector<26xf32>
    %368 = vector.shape_cast %367 : vector<26xf32> to vector<1x26xf32>
    %cst_130 = arith.constant 8.000000e+00 : f32
    %369 = vector.broadcast %cst_130 : f32 to vector<1x26xf32>
    %370 = arith.divf %368, %369 : vector<1x26xf32>
    %371 = arith.mulf %365, %365 : vector<1x26xf32>
    %372 = arith.subf %370, %371 : vector<1x26xf32>
    %373 = vector.broadcast %365 : vector<1x26xf32> to vector<8x26xf32>
    %374 = arith.subf %357, %373 : vector<8x26xf32>
    %cst_131 = arith.constant 9.99999974E-6 : f32
    %375 = vector.broadcast %cst_131 : f32 to vector<1x26xf32>
    %376 = arith.addf %372, %375 : vector<1x26xf32>
    %377 = math.rsqrt %376 : vector<1x26xf32>
    %378 = vector.broadcast %377 : vector<1x26xf32> to vector<8x26xf32>
    %379 = arith.mulf %374, %378 : vector<8x26xf32>
    %380 = vector.broadcast %359 : vector<1x26xf32> to vector<8x26xf32>
    %381 = arith.mulf %379, %380 : vector<8x26xf32>
    %382 = vector.broadcast %361 : vector<1x26xf32> to vector<8x26xf32>
    %383 = arith.addf %381, %382 : vector<8x26xf32>
    %cst_132 = arith.constant 0.000000e+00 : f32
    %384 = vector.broadcast %cst_132 : f32 to vector<8x26xf32>
    %385 = arith.maximumf %383, %384 : vector<8x26xf32>
    %386 = arith.index_cast %311 : i32 to index
    %c0_133 = arith.constant 0 : index
    %c0_134 = arith.constant 0 : index
    %387 = vector.load %arg12[%386, %c0_133, %c0_134] : memref<4x26x16xf32, #tpu.memory_space<vmem>>, vector<1x26x16xf32>
    %388 = vector.shape_cast %387 : vector<1x26x16xf32> to vector<26x16xf32>
    %cst_135 = arith.constant dense<0.000000e+00> : vector<8x16xf32>
    %389 = tpu.matmul %385, %388, %cst_135 {dimension_numbers = #tpu.dot_dimension_numbers<[1], [0], [0], [1], [0, 0, 1, 1], [], []>} : vector<8x26xf32>, vector<26x16xf32>, vector<8x16xf32> -> vector<8x16xf32>
    %390 = arith.index_cast %311 : i32 to index
    %c0_136 = arith.constant 0 : index
    %391 = vector.load %arg13[%390, %c0_136] : memref<4x16xf32, #tpu.memory_space<vmem>>, vector<1x16xf32>
    %392 = vector.broadcast %391 : vector<1x16xf32> to vector<8x16xf32>
    %393 = arith.addf %389, %392 : vector<8x16xf32>
    %394 = vector.broadcast %314 : f32 to vector<8x16xf32>
    %395 = arith.mulf %394, %393 : vector<8x16xf32>
    %396 = arith.subf %321, %395 : vector<8x16xf32>
    %397 = arith.mulf %393, %396 : vector<8x16xf32>
    %cst_137 = arith.constant dense<0.000000e+00> : vector<8xf32>
    %398 = vector.multi_reduction <add>, %397, %cst_137 [1] : vector<8x16xf32> to vector<8xf32>
    %399 = vector.shape_cast %398 : vector<8xf32> to vector<8x1xf32>
    %400 = arith.addf %305, %399 : vector<8x1xf32>
    %cst_138 = arith.constant 2.000000e+00 : f32
    %401 = arith.mulf %cst_138, %314 : f32
    %402 = vector.broadcast %401 : f32 to vector<8x16xf32>
    %403 = arith.mulf %402, %393 : vector<8x16xf32>
    %404 = arith.subf %310, %403 : vector<8x16xf32>
    %405 = arith.addf %404, %321 : vector<8x16xf32>
    %c4_i32_139 = arith.constant 4 : i32
    %c0_140 = arith.constant 0 : index
    %c0_141 = arith.constant 0 : index
    %406 = vector.load %arg14[%c0_140, %c0_141] : memref<8x1xf32, #tpu.memory_space<vmem>>, vector<8x1xf32>
    tpu.vector_store %arg14[%c0_140, %c0_141], %400 {strides = array<i32>} : memref<8x1xf32, #tpu.memory_space<vmem>>, vector<8x1xf32>,
    %c0_142 = arith.constant 0 : index
    %c0_143 = arith.constant 0 : index
    %407 = vector.load %arg15[%c0_142, %c0_143] : memref<8x16xf32, #tpu.memory_space<vmem>>, vector<8x16xf32>
    tpu.vector_store %arg15[%c0_142, %c0_143], %405 {strides = array<i32>} : memref<8x16xf32, #tpu.memory_space<vmem>>, vector<8x16xf32>,
    return
  }
}

</mosaic_0001>

<llo_original>
// kernel: tpu_custom_call.1
$region0: #{tpu_custom_call.1}
  #allocation0 [shape = 'u32[]', space=smem, size = 0x4, offset = 0x4, fixed_abs, tag = 'smem constant byte address 0x4 - core index']
  #allocation1 [shape = 'u32[144,128]{1,0:T(1,128)}', space=vmem, size = 0x12000, scoped, tag = 'internal scratch']
  #allocation2 [shape = 'f32[1]{0:T(128)S(6)}', space=smem, size = 0x200, scoped, tag = 'scoped memory for tpu_custom_call.1']
  %s0 = inlined_call_operand.vmem [shape: f32[5], index: 0, kind: input, shape index: {}]
  %s1 = inlined_call_operand.vmem [shape: f32[5], index: 1, kind: input, shape index: {}]
  %s2 = inlined_call_operand.<no memory space> [shape: f32[1], index: 2, kind: input, shape index: {}]
  %s3 = inlined_call_operand.vmem [shape: f32[1,16], index: 3, kind: input, shape index: {}]
  %s4 = inlined_call_operand.vmem [shape: f32[8,16], index: 4, kind: input, shape index: {}]
  %s5 = inlined_call_operand.vmem [shape: f32[5,8,16], index: 5, kind: input, shape index: {}]
  %s6 = inlined_call_operand.vmem [shape: f32[4,16,26], index: 6, kind: input, shape index: {}]
  %s7 = inlined_call_operand.vmem [shape: f32[4,26], index: 7, kind: input, shape index: {}]
  %s8 = inlined_call_operand.vmem [shape: f32[4,26], index: 8, kind: input, shape index: {}]
  %s9 = inlined_call_operand.vmem [shape: f32[4,26,26], index: 9, kind: input, shape index: {}]
  %s10 = inlined_call_operand.vmem [shape: f32[4,26], index: 10, kind: input, shape index: {}]
  %s11 = inlined_call_operand.vmem [shape: f32[4,26], index: 11, kind: input, shape index: {}]
  %s12 = inlined_call_operand.vmem [shape: f32[4,26,16], index: 12, kind: input, shape index: {}]
  %s13 = inlined_call_operand.vmem [shape: f32[4,16], index: 13, kind: input, shape index: {}]
  %s14 = inlined_call_operand.vmem [shape: f32[8,1], index: 14, kind: output, shape index: {0}]
  %s15 = inlined_call_operand.hbm [shape: f32[8,16], index: 15, kind: output, shape index: {1}]
  %16 = xla_tuple %s14, %s15
  %s17 = sld [smem:[#allocation0]]
  $region82: #{tpu_custom_call.1} parent=0
    _
  %s19 = ssub.s32 1, %s17
  %s20 = scalar_select 0, %s19, %s17
  %21 = sst [smem:[#allocation2]] %s2
  $region1: #{tpu_custom_call.1} parent=0
    #allocation3 [shape = 'u8[512]{0}', space=smem, size = 0x200, scoped, tag = 'input window, operand 0, single buffered']
    #allocation4 [shape = 's32[1]{0}', space=sflag, size = 0x4, scoped, tag = 'scoped memory for tpu_custom_call.1']
    #allocation5 [shape = 's32[1]{0}', space=sflag, size = 0x4, scoped, tag = 'scoped memory for tpu_custom_call.1']
    #allocation6 [shape = 'u8[512]{0}', space=smem, size = 0x200, scoped, tag = 'input window, operand 1, single buffered']
    #allocation7 [shape = 's32[1]{0}', space=sflag, size = 0x4, scoped, tag = 'scoped memory for tpu_custom_call.1']
    #allocation8 [shape = 'u8[4096]{0}', space=vmem, size = 0x1000, scoped, tag = 'output window, operand 1, single buffered']
    %22 = vsyncpa [#allocation5], 0
    %23 = vsyncpa [#allocation7], 0
    %24 = vsyncpa [#allocation4], 0
    // Predicated region
    $region2: #{tpu_custom_call.1} parent=1 // pred_check
      _
    $region3: #{tpu_custom_call.1} parent=1 // pred_check_branch
      %26 = sbr.rel (0) target = $region5
    $region4: #{tpu_custom_call.1} parent=1 // pred_region
      %s28 = ssub.s32 16, 16
      %29 = vsyncadd [#allocation5], %s28
      %s31 = sshll.u32 %s0, 4
      %s32 = int_to_ptr.vmem [resolvable:$true] %s31
      %34 = dma.vmem_to_smem %s32, 16, [#allocation3], [#allocation5]
    $region5: #{tpu_custom_call.1} parent=1 // pred_fallthru
      _
    // Predicated region
    $region6: #{tpu_custom_call.1} parent=1 // pred_check
      _
    $region7: #{tpu_custom_call.1} parent=1 // pred_check_branch
      %36 = sbr.rel (0) target = $region9
    $region8: #{tpu_custom_call.1} parent=1 // pred_region
      %s38 = ssub.s32 16, 16
      %39 = vsyncadd [#allocation7], %s38
      %s41 = sshll.u32 %s1, 4
      %s42 = int_to_ptr.vmem [resolvable:$true] %s41
      %44 = dma.vmem_to_smem %s42, 16, [#allocation6], [#allocation7]
    $region9: #{tpu_custom_call.1} parent=1 // pred_fallthru
      _
    // Predicated region
    $region10: #{tpu_custom_call.1} parent=1 // pred_check
      _
    $region11: #{tpu_custom_call.1} parent=1 // pred_check_branch
      %46 = sbr.rel (0) target = $region13
    $region12: #{tpu_custom_call.1} parent=1 // pred_region
      _
    $region13: #{tpu_custom_call.1} parent=1 // pred_fallthru
      _
    // Predicated region
    $region14: #{tpu_custom_call.1} parent=1 // pred_check
      _
    $region15: #{tpu_custom_call.1} parent=1 // pred_check_branch
      %48 = sbr.rel (0) target = $region17
    $region16: #{tpu_custom_call.1} parent=1 // pred_region
      _
    $region17: #{tpu_custom_call.1} parent=1 // pred_fallthru
      _
    // Predicated region
    $region18: #{tpu_custom_call.1} parent=1 // pred_check
      _
    $region19: #{tpu_custom_call.1} parent=1 // pred_check_branch
      %50 = sbr.rel (0) target = $region21
    $region20: #{tpu_custom_call.1} parent=1 // pred_region
      _
    $region21: #{tpu_custom_call.1} parent=1 // pred_fallthru
      _
    // Predicated region
    $region22: #{tpu_custom_call.1} parent=1 // pred_check
      _
    $region23: #{tpu_custom_call.1} parent=1 // pred_check_branch
      %52 = sbr.rel (0) target = $region25
    $region24: #{tpu_custom_call.1} parent=1 // pred_region
      _
    $region25: #{tpu_custom_call.1} parent=1 // pred_fallthru
      _
    // Predicated region
    $region26: #{tpu_custom_call.1} parent=1 // pred_check
      _
    $region27: #{tpu_custom_call.1} parent=1 // pred_check_branch
      %54 = sbr.rel (0) target = $region29
    $region28: #{tpu_custom_call.1} parent=1 // pred_region
      _
    $region29: #{tpu_custom_call.1} parent=1 // pred_fallthru
      _
    // Predicated region
    $region30: #{tpu_custom_call.1} parent=1 // pred_check
      _
    $region31: #{tpu_custom_call.1} parent=1 // pred_check_branch
      %56 = sbr.rel (0) target = $region33
    $region32: #{tpu_custom_call.1} parent=1 // pred_region
      _
    $region33: #{tpu_custom_call.1} parent=1 // pred_fallthru
      _
    // Predicated region
    $region34: #{tpu_custom_call.1} parent=1 // pred_check
      _
    $region35: #{tpu_custom_call.1} parent=1 // pred_check_branch
      %58 = sbr.rel (0) target = $region37
    $region36: #{tpu_custom_call.1} parent=1 // pred_region
      _
    $region37: #{tpu_custom_call.1} parent=1 // pred_fallthru
      _
    // Predicated region
    $region38: #{tpu_custom_call.1} parent=1 // pred_check
      _
    $region39: #{tpu_custom_call.1} parent=1 // pred_check_branch
      %60 = sbr.rel (0) target = $region41
    $region40: #{tpu_custom_call.1} parent=1 // pred_region
      _
    $region41: #{tpu_custom_call.1} parent=1 // pred_fallthru
      _
    // Predicated region
    $region42: #{tpu_custom_call.1} parent=1 // pred_check
      _
    $region43: #{tpu_custom_call.1} parent=1 // pred_check_branch
      %62 = sbr.rel (0) target = $region45
    $region44: #{tpu_custom_call.1} parent=1 // pred_region
      _
    $region45: #{tpu_custom_call.1} parent=1 // pred_fallthru
      _
    // Predicated region
    $region46: #{tpu_custom_call.1} parent=1 // pred_check
      _
    $region47: #{tpu_custom_call.1} parent=1 // pred_check_branch
      %64 = sbr.rel (0) target = $region49
    $region48: #{tpu_custom_call.1} parent=1 // pred_region
      _
    $region49: #{tpu_custom_call.1} parent=1 // pred_fallthru
      _
    // Predicated region
    $region50: #{tpu_custom_call.1} parent=1 // pred_check
      _
    $region51: #{tpu_custom_call.1} parent=1 // pred_check_branch
      %66 = sbr.rel (0) target = $region53
    $region52: #{tpu_custom_call.1} parent=1 // pred_region
      _
    $region53: #{tpu_custom_call.1} parent=1 // pred_fallthru
      _
    // Predicated region
    $region54: #{tpu_custom_call.1} parent=1 // pred_check
      _
    $region55: #{tpu_custom_call.1} parent=1 // pred_check_branch
      %68 = sbr.rel (0) target = $region57
    $region56: #{tpu_custom_call.1} parent=1 // pred_region
      _
    $region57: #{tpu_custom_call.1} parent=1 // pred_fallthru
      _
    // Predicated region
    $region58: #{tpu_custom_call.1} parent=1 // pred_check
      _
    $region59: #{tpu_custom_call.1} parent=1 // pred_check_branch
      %70 = sbr.rel (0) target = $region61
    $region60: #{tpu_custom_call.1} parent=1 // pred_region
      %71 = dma.done [#allocation5], 16
    $region61: #{tpu_custom_call.1} parent=1 // pred_fallthru
      _
    // Predicated region
    $region62: #{tpu_custom_call.1} parent=1 // pred_check
      _
    $region63: #{tpu_custom_call.1} parent=1 // pred_check_branch
      %73 = sbr.rel (0) target = $region65
    $region64: #{tpu_custom_call.1} parent=1 // pred_region
      %74 = dma.done [#allocation7], 16
    $region65: #{tpu_custom_call.1} parent=1 // pred_fallthru
      _
    %75 = sfence
    %s76 = sld [smem:[#allocation3]]
    %v77 = vld [vmem:[%s3] sm:$0x1]
    %s78 = sld [smem:[#allocation6]]
    %v79 = vld [vmem:[%s5] sm:$0xff]
    %v80 = vstv %s78
    %v81 = vmul.f32 %v80, %v79
    %s82 = sld [smem:[#allocation2]]
    %v83 = vstv %s76
    %v84 = vmul.f32 %v83, %v77
    %v86 = vlaneseq
    %v87 = vshrl.u32 %v86, 7
    %v88 = vsub.s32 0, %v87
    %v89 = vrot.slane %v84, %v88
    %v91 = vsub.f32 %v81, %v89
    %v93 = vlaneseq
    %v94 = vshrl.u32 %v93, 7
    %v95 = vsub.s32 0, %v94
    %v96 = vrot.slane %v77, %v95
    %v98 = vmul.f32 %v96, %v91
    %vm99 = vcmask 130048
    %v100 = vsel %vm99, %v98, 0.0
    %101 = vadd.xlane.f32.xlu0 %v100
    %v102 = vpop.xlane.xlu0 %101
    %v103 = vstv %s82
    %v104 = vadd.f32 %v103, %v102
    %v105 = vld [vmem:[%s4] sm:$0xff]
    %s106 = smul.f32 %s76, 2.0
    %v107 = vstv %s106
    %v108 = vmul.f32 %v107, %v77
    %v110 = vlaneseq
    %v111 = vshrl.u32 %v110, 7
    %v112 = vsub.s32 0, %v111
    %v113 = vrot.slane %v108, %v112
    %v115 = vsub.f32 %v105, %v113
    %v116 = vadd.f32 %v115, %v81
    %s117 = sld [smem:[#allocation3 + $0x1]]
    %s118 = sld [smem:[#allocation6 + $0x1]]
    %s119 = scalar_lea.vmem %s5, 8
    %v120 = vld [vmem:[%s119] sm:$0xff]
    %v121 = vstv %s118
    %v122 = vmul.f32 %v121, %v120
    %v123 = vld [vmem:[%s6] sm:$0xff]
    %v124 = vld [vmem:[%s6 + $0x8] sm:$0xff]
    %v126 = vsel %vm99, %v116, 0
    %128 = vmatprep.subr.mxu0 0.0
    %129 = vmatpush1.msra.mxu0 0.0
    %130 = vmatprep.subr.mxu0 0.0
    %131 = vmatpush1.msra.mxu0 0.0
    %132 = vmatprep.subr.mxu0 0.0
    %133 = vmatpush1.msra.mxu0 0.0
    %134 = vmatprep.subr.mxu0 0.0
    %135 = vmatpush1.msra.mxu0 0.0
    %136 = vmatprep.subr.mxu0 0.0
    %137 = vmatpush1.msra.mxu0 0.0
    %138 = vmatprep.subr.mxu0 0.0
    %139 = vmatpush1.msra.mxu0 0.0
    %140 = vmatprep.subr.mxu0 0.0
    %141 = vmatpush1.msra.mxu0 0.0
    %142 = vmatprep.subr.mxu0 0.0
    %143 = vmatpush1.msra.mxu0 0.0
    %144 = vmatprep.subr.mxu0 0.0
    %145 = vmatpush1.msra.mxu0 0.0
    %146 = vmatprep.subr.mxu0 0.0
    %147 = vmatpush1.msra.mxu0 0.0
    %148 = vmatprep.subr.mxu0 0.0
    %149 = vmatpush1.msra.mxu0 0.0
    %150 = vmatprep.subr.mxu0 0.0
    %151 = vmatpush1.msra.mxu0 0.0
    %152 = vmatprep.subr.mxu0 0.0
    %153 = vmatpush1.msra.mxu0 0.0
    %154 = vmatprep.subr.mxu0 0.0
    %155 = vmatpush1.msra.mxu0 0.0
    %156 = vmatprep.subr.mxu0 0.0
    %157 = vmatpush1.msra.mxu0 %v124
    %158 = vmatprep.subr.mxu0 0.0
    %159 = vmatpush1.msra.mxu0 %v123
    %160 = vmatprep.subr.mxu0 0.0
    %161 = vmatpush2.msra.mxu0 0.0
    %162 = vmatprep.subr.mxu0 0.0
    %163 = vmatpush2.msra.mxu0 0.0
    %164 = vmatprep.subr.mxu0 0.0
    %165 = vmatpush2.msra.mxu0 0.0
    %166 = vmatprep.subr.mxu0 0.0
    %167 = vmatpush2.msra.mxu0 0.0
    %168 = vmatprep.subr.mxu0 0.0
    %169 = vmatpush2.msra.mxu0 0.0
    %170 = vmatprep.subr.mxu0 0.0
    %171 = vmatpush2.msra.mxu0 0.0
    %172 = vmatprep.subr.mxu0 0.0
    %173 = vmatpush2.msra.mxu0 0.0
    %174 = vmatprep.subr.mxu0 0.0
    %175 = vmatpush2.msra.mxu0 0.0
    %176 = vmatprep.subr.mxu0 0.0
    %177 = vmatpush2.msra.mxu0 0.0
    %178 = vmatprep.subr.mxu0 0.0
    %179 = vmatpush2.msra.mxu0 0.0
    %180 = vmatprep.subr.mxu0 0.0
    %181 = vmatpush2.msra.mxu0 0.0
    %182 = vmatprep.subr.mxu0 0.0
    %183 = vmatpush2.msra.mxu0 0.0
    %184 = vmatprep.subr.mxu0 0.0
    %185 = vmatpush2.msra.mxu0 0.0
    %186 = vmatprep.subr.mxu0 0.0
    %187 = vmatpush2.msra.mxu0 0.0
    %188 = vmatprep.subr.mxu0 0.0
    %189 = vmatpush2.msra.mxu0 0.0
    %190 = vmatprep.subr.mxu0 0.0
    %191 = vmatpush2.msra.mxu0 0.0
    %192 = vmatprep.mubr.f32.mxu0 0.0
    %193 = vmatmul.mubr.f32.gmra.mxu0 %v126
    %v194 = vpop.f32.mrf.mxu0
    %v195 = vadd.f32 0.0, %v194
    %v196 = vpop.f32.mrf.mxu0
    %197 = vdwg.mxu0
    %v198 = vld [vmem:[%s7] sm:$0x1]
    %v199 = vld [vmem:[%s8] sm:$0x1]
    %vm200 = vcmask 211968
    %v201 = vsel %vm200, %v195, 0.0
    %v202 = vrot.slane %v201, 4
    %v203 = vadd.f32 %v201, %v202
    %v204 = vrot.slane %v203, 2
    %v205 = vadd.f32 %v203, %v204
    %v206 = vrot.slane %v205, 1
    %v207 = vadd.f32 %v205, %v206
    %v208 = vrcp.pop 8.0
    %v209 = vmul.f32 %v207, %v208
    %v210 = vmul.f32 %v195, %v195
    %v211 = vsel %vm200, %v210, 0.0
    %v212 = vrot.slane %v211, 4
    %v213 = vadd.f32 %v211, %v212
    %v214 = vrot.slane %v213, 2
    %v215 = vadd.f32 %v213, %v214
    %v216 = vrot.slane %v215, 1
    %v217 = vadd.f32 %v215, %v216
    %v218 = vmul.f32 %v217, %v208
    %v219 = vmul.f32 %v209, %v209
    %v220 = vsub.f32 %v218, %v219
    %v221 = vsub.f32 %v195, %v209
    %v222 = vadd.f32 %v220, 1e-05
    %v223 = vrsqrt.pop %v222
    %v224 = vmul.f32 %v221, %v223
    %v225 = vlaneseq
    %v226 = vshrl.u32 %v225, 7
    %v227 = vsub.s32 0, %v226
    %v228 = vrot.slane %v198, %v227
    %v229 = vmul.f32 %v224, %v228
    %v230 = vlaneseq
    %v231 = vshrl.u32 %v230, 7
    %v232 = vsub.s32 0, %v231
    %v233 = vrot.slane %v199, %v232
    %v234 = vadd.f32 %v229, %v233
    %v235 = vmax.f32 %v234, 0.0
    %v236 = vld [vmem:[%s9] sm:$0xff]
    %v237 = vld [vmem:[%s9 + $0x8] sm:$0xff]
    %v238 = vld [vmem:[%s9 + $0x10] sm:$0xff]
    %v239 = vld [vmem:[%s9 + $0x18] sm:$0x3]
    %v241 = vsel %vm200, %v235, 0
    %vm243 = vcmask 1041408
    %v245 = vsel %vm243, %v239, 0
    %247 = vmatprep.subr.mxu0 0.0
    %248 = vmatpush1.msra.mxu0 0.0
    %249 = vmatprep.subr.mxu0 0.0
    %250 = vmatpush1.msra.mxu0 0.0
    %251 = vmatprep.subr.mxu0 0.0
    %252 = vmatpush1.msra.mxu0 0.0
    %253 = vmatprep.subr.mxu0 0.0
    %254 = vmatpush1.msra.mxu0 0.0
    %255 = vmatprep.subr.mxu0 0.0
    %256 = vmatpush1.msra.mxu0 0.0
    %257 = vmatprep.subr.mxu0 0.0
    %258 = vmatpush1.msra.mxu0 0.0
    %259 = vmatprep.subr.mxu0 0.0
    %260 = vmatpush1.msra.mxu0 0.0
    %261 = vmatprep.subr.mxu0 0.0
    %262 = vmatpush1.msra.mxu0 0.0
    %263 = vmatprep.subr.mxu0 0.0
    %264 = vmatpush1.msra.mxu0 0.0
    %265 = vmatprep.subr.mxu0 0.0
    %266 = vmatpush1.msra.mxu0 0.0
    %267 = vmatprep.subr.mxu0 0.0
    %268 = vmatpush1.msra.mxu0 0.0
    %269 = vmatprep.subr.mxu0 0.0
    %270 = vmatpush1.msra.mxu0 0.0
    %271 = vmatprep.subr.mxu0 0.0
    %272 = vmatpush1.msra.mxu0 %v245
    %273 = vmatprep.subr.mxu0 0.0
    %274 = vmatpush1.msra.mxu0 %v238
    %275 = vmatprep.subr.mxu0 0.0
    %276 = vmatpush1.msra.mxu0 %v237
    %277 = vmatprep.subr.mxu0 0.0
    %278 = vmatpush1.msra.mxu0 %v236
    %279 = vmatprep.subr.mxu0 0.0
    %280 = vmatpush2.msra.mxu0 0.0
    %281 = vmatprep.subr.mxu0 0.0
    %282 = vmatpush2.msra.mxu0 0.0
    %283 = vmatprep.subr.mxu0 0.0
    %284 = vmatpush2.msra.mxu0 0.0
    %285 = vmatprep.subr.mxu0 0.0
    %286 = vmatpush2.msra.mxu0 0.0
    %287 = vmatprep.subr.mxu0 0.0
    %288 = vmatpush2.msra.mxu0 0.0
    %289 = vmatprep.subr.mxu0 0.0
    %290 = vmatpush2.msra.mxu0 0.0
    %291 = vmatprep.subr.mxu0 0.0
    %292 = vmatpush2.msra.mxu0 0.0
    %293 = vmatprep.subr.mxu0 0.0
    %294 = vmatpush2.msra.mxu0 0.0
    %295 = vmatprep.subr.mxu0 0.0
    %296 = vmatpush2.msra.mxu0 0.0
    %297 = vmatprep.subr.mxu0 0.0
    %298 = vmatpush2.msra.mxu0 0.0
    %299 = vmatprep.subr.mxu0 0.0
    %300 = vmatpush2.msra.mxu0 0.0
    %301 = vmatprep.subr.mxu0 0.0
    %302 = vmatpush2.msra.mxu0 0.0
    %303 = vmatprep.subr.mxu0 0.0
    %304 = vmatpush2.msra.mxu0 0.0
    %305 = vmatprep.subr.mxu0 0.0
    %306 = vmatpush2.msra.mxu0 0.0
    %307 = vmatprep.subr.mxu0 0.0
    %308 = vmatpush2.msra.mxu0 0.0
    %309 = vmatprep.subr.mxu0 0.0
    %310 = vmatpush2.msra.mxu0 0.0
    %311 = vmatprep.mubr.f32.mxu0 0.0
    %312 = vmatmul.mubr.f32.gmra.mxu0 %v241
    %v313 = vpop.f32.mrf.mxu0
    %v314 = vadd.f32 0.0, %v313
    %v315 = vpop.f32.mrf.mxu0
    %316 = vdwg.mxu0
    %v317 = vld [vmem:[%s10] sm:$0x1]
    %v318 = vld [vmem:[%s11] sm:$0x1]
    %v319 = vsel %vm200, %v314, 0.0
    %v320 = vrot.slane %v319, 4
    %v321 = vadd.f32 %v319, %v320
    %v322 = vrot.slane %v321, 2
    %v323 = vadd.f32 %v321, %v322
    %v324 = vrot.slane %v323, 1
    %v325 = vadd.f32 %v323, %v324
    %v326 = vmul.f32 %v325, %v208
    %v327 = vmul.f32 %v314, %v314
    %v328 = vsel %vm200, %v327, 0.0
    %v329 = vrot.slane %v328, 4
    %v330 = vadd.f32 %v328, %v329
    %v331 = vrot.slane %v330, 2
    %v332 = vadd.f32 %v330, %v331
    %v333 = vrot.slane %v332, 1
    %v334 = vadd.f32 %v332, %v333
    %v335 = vmul.f32 %v334, %v208
    %v336 = vmul.f32 %v326, %v326
    %v337 = vsub.f32 %v335, %v336
    %v338 = vsub.f32 %v314, %v326
    %v339 = vadd.f32 %v337, 1e-05
    %v340 = vrsqrt.pop %v339
    %v341 = vmul.f32 %v338, %v340
    %v342 = vlaneseq
    %v343 = vshrl.u32 %v342, 7
    %v344 = vsub.s32 0, %v343
    %v345 = vrot.slane %v317, %v344
    %v346 = vmul.f32 %v341, %v345
    %v347 = vlaneseq
    %v348 = vshrl.u32 %v347, 7
    %v349 = vsub.s32 0, %v348
    %v350 = vrot.slane %v318, %v349
    %v351 = vadd.f32 %v346, %v350
    %v352 = vmax.f32 %v351, 0.0
    %v353 = vld [vmem:[%s12] sm:$0xff]
    %v354 = vld [vmem:[%s12 + $0x8] sm:$0xff]
    %v355 = vld [vmem:[%s12 + $0x10] sm:$0xff]
    %v356 = vld [vmem:[%s12 + $0x18] sm:$0x3]
    %v357 = vld [vmem:[%s13] sm:$0x1]
    %v358 = vlaneseq
    %v359 = vshrl.u32 %v358, 7
    %v360 = vsub.s32 0, %v359
    %v361 = vrot.slane %v357, %v360
    %v363 = vsel %vm200, %v352, 0
    %v366 = vsel %vm243, %v356, 0
    %368 = vmatprep.subr.mxu0 0.0
    %369 = vmatpush1.msra.mxu0 0.0
    %370 = vmatprep.subr.mxu0 0.0
    %371 = vmatpush1.msra.mxu0 0.0
    %372 = vmatprep.subr.mxu0 0.0
    %373 = vmatpush1.msra.mxu0 0.0
    %374 = vmatprep.subr.mxu0 0.0
    %375 = vmatpush1.msra.mxu0 0.0
    %376 = vmatprep.subr.mxu0 0.0
    %377 = vmatpush1.msra.mxu0 0.0
    %378 = vmatprep.subr.mxu0 0.0
    %379 = vmatpush1.msra.mxu0 0.0
    %380 = vmatprep.subr.mxu0 0.0
    %381 = vmatpush1.msra.mxu0 0.0
    %382 = vmatprep.subr.mxu0 0.0
    %383 = vmatpush1.msra.mxu0 0.0
    %384 = vmatprep.subr.mxu0 0.0
    %385 = vmatpush1.msra.mxu0 0.0
    %386 = vmatprep.subr.mxu0 0.0
    %387 = vmatpush1.msra.mxu0 0.0
    %388 = vmatprep.subr.mxu0 0.0
    %389 = vmatpush1.msra.mxu0 0.0
    %390 = vmatprep.subr.mxu0 0.0
    %391 = vmatpush1.msra.mxu0 0.0
    %392 = vmatprep.subr.mxu0 0.0
    %393 = vmatpush1.msra.mxu0 %v366
    %394 = vmatprep.subr.mxu0 0.0
    %395 = vmatpush1.msra.mxu0 %v355
    %396 = vmatprep.subr.mxu0 0.0
    %397 = vmatpush1.msra.mxu0 %v354
    %398 = vmatprep.subr.mxu0 0.0
    %399 = vmatpush1.msra.mxu0 %v353
    %400 = vmatprep.subr.mxu0 0.0
    %401 = vmatpush2.msra.mxu0 0.0
    %402 = vmatprep.subr.mxu0 0.0
    %403 = vmatpush2.msra.mxu0 0.0
    %404 = vmatprep.subr.mxu0 0.0
    %405 = vmatpush2.msra.mxu0 0.0
    %406 = vmatprep.subr.mxu0 0.0
    %407 = vmatpush2.msra.mxu0 0.0
    %408 = vmatprep.subr.mxu0 0.0
    %409 = vmatpush2.msra.mxu0 0.0
    %410 = vmatprep.subr.mxu0 0.0
    %411 = vmatpush2.msra.mxu0 0.0
    %412 = vmatprep.subr.mxu0 0.0
    %413 = vmatpush2.msra.mxu0 0.0
    %414 = vmatprep.subr.mxu0 0.0
    %415 = vmatpush2.msra.mxu0 0.0
    %416 = vmatprep.subr.mxu0 0.0
    %417 = vmatpush2.msra.mxu0 0.0
    %418 = vmatprep.subr.mxu0 0.0
    %419 = vmatpush2.msra.mxu0 0.0
    %420 = vmatprep.subr.mxu0 0.0
    %421 = vmatpush2.msra.mxu0 0.0
    %422 = vmatprep.subr.mxu0 0.0
    %423 = vmatpush2.msra.mxu0 0.0
    %424 = vmatprep.subr.mxu0 0.0
    %425 = vmatpush2.msra.mxu0 0.0
    %426 = vmatprep.subr.mxu0 0.0
    %427 = vmatpush2.msra.mxu0 0.0
    %428 = vmatprep.subr.mxu0 0.0
    %429 = vmatpush2.msra.mxu0 0.0
    %430 = vmatprep.subr.mxu0 0.0
    %431 = vmatpush2.msra.mxu0 0.0
    %432 = vmatprep.mubr.f32.mxu0 0.0
    %433 = vmatmul.mubr.f32.gmra.mxu0 %v363
    %v434 = vpop.f32.mrf.mxu0
    %v435 = vadd.f32 %v361, %v434
    %v436 = vpop.f32.mrf.mxu0
    %437 = vdwg.mxu0
    %v438 = vstv %s117
    %v439 = vmul.f32 %v438, %v435
    %v440 = vsub.f32 %v122, %v439
    %v441 = vmul.f32 %v435, %v440
    %v442 = vsel %vm99, %v441, 0.0
    %443 = vadd.xlane.f32.xlu0 %v442
    %v444 = vpop.xlane.xlu0 %443
    %v445 = vadd.f32 %v104, %v444
    %s446 = smul.f32 %s117, 2.0
    %v447 = vstv %s446
    %v448 = vmul.f32 %v447, %v435
    %v449 = vsub.f32 %v116, %v448
    %v450 = vadd.f32 %v449, %v122
    %s451 = sld [smem:[#allocation3 + $0x2]]
    %s452 = sld [smem:[#allocation6 + $0x2]]
    %s453 = scalar_lea.vmem %s5, 16
    %v454 = vld [vmem:[%s453] sm:$0xff]
    %v455 = vstv %s452
    %v456 = vmul.f32 %v455, %v454
    %s457 = scalar_lea.vmem %s6, 16
    %v458 = vld [vmem:[%s457] sm:$0xff]
    %v459 = vld [vmem:[%s457 + $0x8] sm:$0xff]
    %v461 = vsel %vm99, %v450, 0
    %463 = vmatprep.subr.mxu0 0.0
    %464 = vmatpush1.msra.mxu0 0.0
    %465 = vmatprep.subr.mxu0 0.0
    %466 = vmatpush1.msra.mxu0 0.0
    %467 = vmatprep.subr.mxu0 0.0
    %468 = vmatpush1.msra.mxu0 0.0
    %469 = vmatprep.subr.mxu0 0.0
    %470 = vmatpush1.msra.mxu0 0.0
    %471 = vmatprep.subr.mxu0 0.0
    %472 = vmatpush1.msra.mxu0 0.0
    %473 = vmatprep.subr.mxu0 0.0
    %474 = vmatpush1.msra.mxu0 0.0
    %475 = vmatprep.subr.mxu0 0.0
    %476 = vmatpush1.msra.mxu0 0.0
    %477 = vmatprep.subr.mxu0 0.0
    %478 = vmatpush1.msra.mxu0 0.0
    %479 = vmatprep.subr.mxu0 0.0
    %480 = vmatpush1.msra.mxu0 0.0
    %481 = vmatprep.subr.mxu0 0.0
    %482 = vmatpush1.msra.mxu0 0.0
    %483 = vmatprep.subr.mxu0 0.0
    %484 = vmatpush1.msra.mxu0 0.0
    %485 = vmatprep.subr.mxu0 0.0
    %486 = vmatpush1.msra.mxu0 0.0
    %487 = vmatprep.subr.mxu0 0.0
    %488 = vmatpush1.msra.mxu0 0.0
    %489 = vmatprep.subr.mxu0 0.0
    %490 = vmatpush1.msra.mxu0 0.0
    %491 = vmatprep.subr.mxu0 0.0
    %492 = vmatpush1.msra.mxu0 %v459
    %493 = vmatprep.subr.mxu0 0.0
    %494 = vmatpush1.msra.mxu0 %v458
    %495 = vmatprep.subr.mxu0 0.0
    %496 = vmatpush2.msra.mxu0 0.0
    %497 = vmatprep.subr.mxu0 0.0
    %498 = vmatpush2.msra.mxu0 0.0
    %499 = vmatprep.subr.mxu0 0.0
    %500 = vmatpush2.msra.mxu0 0.0
    %501 = vmatprep.subr.mxu0 0.0
    %502 = vmatpush2.msra.mxu0 0.0
    %503 = vmatprep.subr.mxu0 0.0
    %504 = vmatpush2.msra.mxu0 0.0
    %505 = vmatprep.subr.mxu0 0.0
    %506 = vmatpush2.msra.mxu0 0.0
    %507 = vmatprep.subr.mxu0 0.0
    %508 = vmatpush2.msra.mxu0 0.0
    %509 = vmatprep.subr.mxu0 0.0
    %510 = vmatpush2.msra.mxu0 0.0
    %511 = vmatprep.subr.mxu0 0.0
    %512 = vmatpush2.msra.mxu0 0.0
    %513 = vmatprep.subr.mxu0 0.0
    %514 = vmatpush2.msra.mxu0 0.0
    %515 = vmatprep.subr.mxu0 0.0
    %516 = vmatpush2.msra.mxu0 0.0
    %517 = vmatprep.subr.mxu0 0.0
    %518 = vmatpush2.msra.mxu0 0.0
    %519 = vmatprep.subr.mxu0 0.0
    %520 = vmatpush2.msra.mxu0 0.0
    %521 = vmatprep.subr.mxu0 0.0
    %522 = vmatpush2.msra.mxu0 0.0
    %523 = vmatprep.subr.mxu0 0.0
    %524 = vmatpush2.msra.mxu0 0.0
    %525 = vmatprep.subr.mxu0 0.0
    %526 = vmatpush2.msra.mxu0 0.0
    %527 = vmatprep.mubr.f32.mxu0 0.0
    %528 = vmatmul.mubr.f32.gmra.mxu0 %v461
    %v529 = vpop.f32.mrf.mxu0
    %v530 = vadd.f32 0.0, %v529
    %v531 = vpop.f32.mrf.mxu0
    %532 = vdwg.mxu0
    %v533 = vld [vmem:[%s7 + $0x1] sm:$0x1]
    %v534 = vld [vmem:[%s8 + $0x1] sm:$0x1]
    %v535 = vsel %vm200, %v530, 0.0
    %v536 = vrot.slane %v535, 4
    %v537 = vadd.f32 %v535, %v536
    %v538 = vrot.slane %v537, 2
    %v539 = vadd.f32 %v537, %v538
    %v540 = vrot.slane %v539, 1
    %v541 = vadd.f32 %v539, %v540
    %v542 = vmul.f32 %v541, %v208
    %v543 = vmul.f32 %v530, %v530
    %v544 = vsel %vm200, %v543, 0.0
    %v545 = vrot.slane %v544, 4
    %v546 = vadd.f32 %v544, %v545
    %v547 = vrot.slane %v546, 2
    %v548 = vadd.f32 %v546, %v547
    %v549 = vrot.slane %v548, 1
    %v550 = vadd.f32 %v548, %v549
    %v551 = vmul.f32 %v550, %v208
    %v552 = vmul.f32 %v542, %v542
    %v553 = vsub.f32 %v551, %v552
    %v554 = vsub.f32 %v530, %v542
    %v555 = vadd.f32 %v553, 1e-05
    %v556 = vrsqrt.pop %v555
    %v557 = vmul.f32 %v554, %v556
    %v558 = vlaneseq
    %v559 = vshrl.u32 %v558, 7
    %v560 = vsub.s32 0, %v559
    %v561 = vrot.slane %v533, %v560
    %v562 = vmul.f32 %v557, %v561
    %v563 = vlaneseq
    %v564 = vshrl.u32 %v563, 7
    %v565 = vsub.s32 0, %v564
    %v566 = vrot.slane %v534, %v565
    %v567 = vadd.f32 %v562, %v566
    %v568 = vmax.f32 %v567, 0.0
    %s569 = scalar_lea.vmem %s9, 32
    %v570 = vld [vmem:[%s569] sm:$0xff]
    %v571 = vld [vmem:[%s569 + $0x8] sm:$0xff]
    %v572 = vld [vmem:[%s569 + $0x10] sm:$0xff]
    %v573 = vld [vmem:[%s569 + $0x18] sm:$0x3]
    %v575 = vsel %vm200, %v568, 0
    %v578 = vsel %vm243, %v573, 0
    %580 = vmatprep.subr.mxu0 0.0
    %581 = vmatpush1.msra.mxu0 0.0
    %582 = vmatprep.subr.mxu0 0.0
    %583 = vmatpush1.msra.mxu0 0.0
    %584 = vmatprep.subr.mxu0 0.0
    %585 = vmatpush1.msra.mxu0 0.0
    %586 = vmatprep.subr.mxu0 0.0
    %587 = vmatpush1.msra.mxu0 0.0
    %588 = vmatprep.subr.mxu0 0.0
    %589 = vmatpush1.msra.mxu0 0.0
    %590 = vmatprep.subr.mxu0 0.0
    %591 = vmatpush1.msra.mxu0 0.0
    %592 = vmatprep.subr.mxu0 0.0
    %593 = vmatpush1.msra.mxu0 0.0
    %594 = vmatprep.subr.mxu0 0.0
    %595 = vmatpush1.msra.mxu0 0.0
    %596 = vmatprep.subr.mxu0 0.0
    %597 = vmatpush1.msra.mxu0 0.0
    %598 = vmatprep.subr.mxu0 0.0
    %599 = vmatpush1.msra.mxu0 0.0
    %600 = vmatprep.subr.mxu0 0.0
    %601 = vmatpush1.msra.mxu0 0.0
    %602 = vmatprep.subr.mxu0 0.0
    %603 = vmatpush1.msra.mxu0 0.0
    %604 = vmatprep.subr.mxu0 0.0
    %605 = vmatpush1.msra.mxu0 %v578
    %606 = vmatprep.subr.mxu0 0.0
    %607 = vmatpush1.msra.mxu0 %v572
    %608 = vmatprep.subr.mxu0 0.0
    %609 = vmatpush1.msra.mxu0 %v571
    %610 = vmatprep.subr.mxu0 0.0
    %611 = vmatpush1.msra.mxu0 %v570
    %612 = vmatprep.subr.mxu0 0.0
    %613 = vmatpush2.msra.mxu0 0.0
    %614 = vmatprep.subr.mxu0 0.0
    %615 = vmatpush2.msra.mxu0 0.0
    %616 = vmatprep.subr.mxu0 0.0
    %617 = vmatpush2.msra.mxu0 0.0
    %618 = vmatprep.subr.mxu0 0.0
    %619 = vmatpush2.msra.mxu0 0.0
    %620 = vmatprep.subr.mxu0 0.0
    %621 = vmatpush2.msra.mxu0 0.0
    %622 = vmatprep.subr.mxu0 0.0
    %623 = vmatpush2.msra.mxu0 0.0
    %624 = vmatprep.subr.mxu0 0.0
    %625 = vmatpush2.msra.mxu0 0.0
    %626 = vmatprep.subr.mxu0 0.0
    %627 = vmatpush2.msra.mxu0 0.0
    %628 = vmatprep.subr.mxu0 0.0
    %629 = vmatpush2.msra.mxu0 0.0
    %630 = vmatprep.subr.mxu0 0.0
    %631 = vmatpush2.msra.mxu0 0.0
    %632 = vmatprep.subr.mxu0 0.0
    %633 = vmatpush2.msra.mxu0 0.0
    %634 = vmatprep.subr.mxu0 0.0
    %635 = vmatpush2.msra.mxu0 0.0
    %636 = vmatprep.subr.mxu0 0.0
    %637 = vmatpush2.msra.mxu0 0.0
    %638 = vmatprep.subr.mxu0 0.0
    %639 = vmatpush2.msra.mxu0 0.0
    %640 = vmatprep.subr.mxu0 0.0
    %641 = vmatpush2.msra.mxu0 0.0
    %642 = vmatprep.subr.mxu0 0.0
    %643 = vmatpush2.msra.mxu0 0.0
    %644 = vmatprep.mubr.f32.mxu0 0.0
    %645 = vmatmul.mubr.f32.gmra.mxu0 %v575
    %v646 = vpop.f32.mrf.mxu0
    %v647 = vadd.f32 0.0, %v646
    %v648 = vpop.f32.mrf.mxu0
    %649 = vdwg.mxu0
    %v650 = vld [vmem:[%s10 + $0x1] sm:$0x1]
    %v651 = vld [vmem:[%s11 + $0x1] sm:$0x1]
    %v652 = vsel %vm200, %v647, 0.0
    %v653 = vrot.slane %v652, 4
    %v654 = vadd.f32 %v652, %v653
    %v655 = vrot.slane %v654, 2
    %v656 = vadd.f32 %v654, %v655
    %v657 = vrot.slane %v656, 1
    %v658 = vadd.f32 %v656, %v657
    %v659 = vmul.f32 %v658, %v208
    %v660 = vmul.f32 %v647, %v647
    %v661 = vsel %vm200, %v660, 0.0
    %v662 = vrot.slane %v661, 4
    %v663 = vadd.f32 %v661, %v662
    %v664 = vrot.slane %v663, 2
    %v665 = vadd.f32 %v663, %v664
    %v666 = vrot.slane %v665, 1
    %v667 = vadd.f32 %v665, %v666
    %v668 = vmul.f32 %v667, %v208
    %v669 = vmul.f32 %v659, %v659
    %v670 = vsub.f32 %v668, %v669
    %v671 = vsub.f32 %v647, %v659
    %v672 = vadd.f32 %v670, 1e-05
    %v673 = vrsqrt.pop %v672
    %v674 = vmul.f32 %v671, %v673
    %v675 = vlaneseq
    %v676 = vshrl.u32 %v675, 7
    %v677 = vsub.s32 0, %v676
    %v678 = vrot.slane %v650, %v677
    %v679 = vmul.f32 %v674, %v678
    %v680 = vlaneseq
    %v681 = vshrl.u32 %v680, 7
    %v682 = vsub.s32 0, %v681
    %v683 = vrot.slane %v651, %v682
    %v684 = vadd.f32 %v679, %v683
    %v685 = vmax.f32 %v684, 0.0
    %s686 = scalar_lea.vmem %s12, 32
    %v687 = vld [vmem:[%s686] sm:$0xff]
    %v688 = vld [vmem:[%s686 + $0x8] sm:$0xff]
    %v689 = vld [vmem:[%s686 + $0x10] sm:$0xff]
    %v690 = vld [vmem:[%s686 + $0x18] sm:$0x3]
    %v691 = vld [vmem:[%s13 + $0x1] sm:$0x1]
    %v692 = vlaneseq
    %v693 = vshrl.u32 %v692, 7
    %v694 = vsub.s32 0, %v693
    %v695 = vrot.slane %v691, %v694
    %v697 = vsel %vm200, %v685, 0
    %v700 = vsel %vm243, %v690, 0
    %702 = vmatprep.subr.mxu0 0.0
    %703 = vmatpush1.msra.mxu0 0.0
    %704 = vmatprep.subr.mxu0 0.0
    %705 = vmatpush1.msra.mxu0 0.0
    %706 = vmatprep.subr.mxu0 0.0
    %707 = vmatpush1.msra.mxu0 0.0
    %708 = vmatprep.subr.mxu0 0.0
    %709 = vmatpush1.msra.mxu0 0.0
    %710 = vmatprep.subr.mxu0 0.0
    %711 = vmatpush1.msra.mxu0 0.0
    %712 = vmatprep.subr.mxu0 0.0
    %713 = vmatpush1.msra.mxu0 0.0
    %714 = vmatprep.subr.mxu0 0.0
    %715 = vmatpush1.msra.mxu0 0.0
    %716 = vmatprep.subr.mxu0 0.0
    %717 = vmatpush1.msra.mxu0 0.0
    %718 = vmatprep.subr.mxu0 0.0
    %719 = vmatpush1.msra.mxu0 0.0
    %720 = vmatprep.subr.mxu0 0.0
    %721 = vmatpush1.msra.mxu0 0.0
    %722 = vmatprep.subr.mxu0 0.0
    %723 = vmatpush1.msra.mxu0 0.0
    %724 = vmatprep.subr.mxu0 0.0
    %725 = vmatpush1.msra.mxu0 0.0
    %726 = vmatprep.subr.mxu0 0.0
    %727 = vmatpush1.msra.mxu0 %v700
    %728 = vmatprep.subr.mxu0 0.0
    %729 = vmatpush1.msra.mxu0 %v689
    %730 = vmatprep.subr.mxu0 0.0
    %731 = vmatpush1.msra.mxu0 %v688
    %732 = vmatprep.subr.mxu0 0.0
    %733 = vmatpush1.msra.mxu0 %v687
    %734 = vmatprep.subr.mxu0 0.0
    %735 = vmatpush2.msra.mxu0 0.0
    %736 = vmatprep.subr.mxu0 0.0
    %737 = vmatpush2.msra.mxu0 0.0
    %738 = vmatprep.subr.mxu0 0.0
    %739 = vmatpush2.msra.mxu0 0.0
    %740 = vmatprep.subr.mxu0 0.0
    %741 = vmatpush2.msra.mxu0 0.0
    %742 = vmatprep.subr.mxu0 0.0
    %743 = vmatpush2.msra.mxu0 0.0
    %744 = vmatprep.subr.mxu0 0.0
    %745 = vmatpush2.msra.mxu0 0.0
    %746 = vmatprep.subr.mxu0 0.0
    %747 = vmatpush2.msra.mxu0 0.0
    %748 = vmatprep.subr.mxu0 0.0
    %749 = vmatpush2.msra.mxu0 0.0
    %750 = vmatprep.subr.mxu0 0.0
    %751 = vmatpush2.msra.mxu0 0.0
    %752 = vmatprep.subr.mxu0 0.0
    %753 = vmatpush2.msra.mxu0 0.0
    %754 = vmatprep.subr.mxu0 0.0
    %755 = vmatpush2.msra.mxu0 0.0
    %756 = vmatprep.subr.mxu0 0.0
    %757 = vmatpush2.msra.mxu0 0.0
    %758 = vmatprep.subr.mxu0 0.0
    %759 = vmatpush2.msra.mxu0 0.0
    %760 = vmatprep.subr.mxu0 0.0
    %761 = vmatpush2.msra.mxu0 0.0
    %762 = vmatprep.subr.mxu0 0.0
    %763 = vmatpush2.msra.mxu0 0.0
    %764 = vmatprep.subr.mxu0 0.0
    %765 = vmatpush2.msra.mxu0 0.0
    %766 = vmatprep.mubr.f32.mxu0 0.0
    %767 = vmatmul.mubr.f32.gmra.mxu0 %v697
    %v768 = vpop.f32.mrf.mxu0
    %v769 = vadd.f32 %v695, %v768
    %v770 = vpop.f32.mrf.mxu0
    %771 = vdwg.mxu0
    %v772 = vstv %s451
    %v773 = vmul.f32 %v772, %v769
    %v774 = vsub.f32 %v456, %v773
    %v775 = vmul.f32 %v769, %v774
    %v776 = vsel %vm99, %v775, 0.0
    %777 = vadd.xlane.f32.xlu0 %v776
    %v778 = vpop.xlane.xlu0 %777
    %v779 = vadd.f32 %v445, %v778
    %s780 = smul.f32 %s451, 2.0
    %v781 = vstv %s780
    %v782 = vmul.f32 %v781, %v769
    %v783 = vsub.f32 %v450, %v782
    %v784 = vadd.f32 %v783, %v456
    %s785 = sld [smem:[#allocation3 + $0x3]]
    %s786 = sld [smem:[#allocation6 + $0x3]]
    %s787 = scalar_lea.vmem %s5, 24
    %v788 = vld [vmem:[%s787] sm:$0xff]
    %v789 = vstv %s786
    %v790 = vmul.f32 %v789, %v788
    %s791 = scalar_lea.vmem %s6, 32
    %v792 = vld [vmem:[%s791] sm:$0xff]
    %v793 = vld [vmem:[%s791 + $0x8] sm:$0xff]
    %v795 = vsel %vm99, %v784, 0
    %797 = vmatprep.subr.mxu0 0.0
    %798 = vmatpush1.msra.mxu0 0.0
    %799 = vmatprep.subr.mxu0 0.0
    %800 = vmatpush1.msra.mxu0 0.0
    %801 = vmatprep.subr.mxu0 0.0
    %802 = vmatpush1.msra.mxu0 0.0
    %803 = vmatprep.subr.mxu0 0.0
    %804 = vmatpush1.msra.mxu0 0.0
    %805 = vmatprep.subr.mxu0 0.0
    %806 = vmatpush1.msra.mxu0 0.0
    %807 = vmatprep.subr.mxu0 0.0
    %808 = vmatpush1.msra.mxu0 0.0
    %809 = vmatprep.subr.mxu0 0.0
    %810 = vmatpush1.msra.mxu0 0.0
    %811 = vmatprep.subr.mxu0 0.0
    %812 = vmatpush1.msra.mxu0 0.0
    %813 = vmatprep.subr.mxu0 0.0
    %814 = vmatpush1.msra.mxu0 0.0
    %815 = vmatprep.subr.mxu0 0.0
    %816 = vmatpush1.msra.mxu0 0.0
    %817 = vmatprep.subr.mxu0 0.0
    %818 = vmatpush1.msra.mxu0 0.0
    %819 = vmatprep.subr.mxu0 0.0
    %820 = vmatpush1.msra.mxu0 0.0
    %821 = vmatprep.subr.mxu0 0.0
    %822 = vmatpush1.msra.mxu0 0.0
    %823 = vmatprep.subr.mxu0 0.0
    %824 = vmatpush1.msra.mxu0 0.0
    %825 = vmatprep.subr.mxu0 0.0
    %826 = vmatpush1.msra.mxu0 %v793
    %827 = vmatprep.subr.mxu0 0.0
    %828 = vmatpush1.msra.mxu0 %v792
    %829 = vmatprep.subr.mxu0 0.0
    %830 = vmatpush2.msra.mxu0 0.0
    %831 = vmatprep.subr.mxu0 0.0
    %832 = vmatpush2.msra.mxu0 0.0
    %833 = vmatprep.subr.mxu0 0.0
    %834 = vmatpush2.msra.mxu0 0.0
    %835 = vmatprep.subr.mxu0 0.0
    %836 = vmatpush2.msra.mxu0 0.0
    %837 = vmatprep.subr.mxu0 0.0
    %838 = vmatpush2.msra.mxu0 0.0
    %839 = vmatprep.subr.mxu0 0.0
    %840 = vmatpush2.msra.mxu0 0.0
    %841 = vmatprep.subr.mxu0 0.0
    %842 = vmatpush2.msra.mxu0 0.0
    %843 = vmatprep.subr.mxu0 0.0
    %844 = vmatpush2.msra.mxu0 0.0
    %845 = vmatprep.subr.mxu0 0.0
    %846 = vmatpush2.msra.mxu0 0.0
    %847 = vmatprep.subr.mxu0 0.0
    %848 = vmatpush2.msra.mxu0 0.0
    %849 = vmatprep.subr.mxu0 0.0
    %850 = vmatpush2.msra.mxu0 0.0
    %851 = vmatprep.subr.mxu0 0.0
    %852 = vmatpush2.msra.mxu0 0.0
    %853 = vmatprep.subr.mxu0 0.0
    %854 = vmatpush2.msra.mxu0 0.0
    %855 = vmatprep.subr.mxu0 0.0
    %856 = vmatpush2.msra.mxu0 0.0
    %857 = vmatprep.subr.mxu0 0.0
    %858 = vmatpush2.msra.mxu0 0.0
    %859 = vmatprep.subr.mxu0 0.0
    %860 = vmatpush2.msra.mxu0 0.0
    %861 = vmatprep.mubr.f32.mxu0 0.0
    %862 = vmatmul.mubr.f32.gmra.mxu0 %v795
    %v863 = vpop.f32.mrf.mxu0
    %v864 = vadd.f32 0.0, %v863
    %v865 = vpop.f32.mrf.mxu0
    %866 = vdwg.mxu0
    %v867 = vld [vmem:[%s7 + $0x2] sm:$0x1]
    %v868 = vld [vmem:[%s8 + $0x2] sm:$0x1]
    %v869 = vsel %vm200, %v864, 0.0
    %v870 = vrot.slane %v869, 4
    %v871 = vadd.f32 %v869, %v870
    %v872 = vrot.slane %v871, 2
    %v873 = vadd.f32 %v871, %v872
    %v874 = vrot.slane %v873, 1
    %v875 = vadd.f32 %v873, %v874
    %v876 = vmul.f32 %v875, %v208
    %v877 = vmul.f32 %v864, %v864
    %v878 = vsel %vm200, %v877, 0.0
    %v879 = vrot.slane %v878, 4
    %v880 = vadd.f32 %v878, %v879
    %v881 = vrot.slane %v880, 2
    %v882 = vadd.f32 %v880, %v881
    %v883 = vrot.slane %v882, 1
    %v884 = vadd.f32 %v882, %v883
    %v885 = vmul.f32 %v884, %v208
    %v886 = vmul.f32 %v876, %v876
    %v887 = vsub.f32 %v885, %v886
    %v888 = vsub.f32 %v864, %v876
    %v889 = vadd.f32 %v887, 1e-05
    %v890 = vrsqrt.pop %v889
    %v891 = vmul.f32 %v888, %v890
    %v892 = vlaneseq
    %v893 = vshrl.u32 %v892, 7
    %v894 = vsub.s32 0, %v893
    %v895 = vrot.slane %v867, %v894
    %v896 = vmul.f32 %v891, %v895
    %v897 = vlaneseq
    %v898 = vshrl.u32 %v897, 7
    %v899 = vsub.s32 0, %v898
    %v900 = vrot.slane %v868, %v899
    %v901 = vadd.f32 %v896, %v900
    %v902 = vmax.f32 %v901, 0.0
    %s903 = scalar_lea.vmem %s9, 64
    %v904 = vld [vmem:[%s903] sm:$0xff]
    %v905 = vld [vmem:[%s903 + $0x8] sm:$0xff]
    %v906 = vld [vmem:[%s903 + $0x10] sm:$0xff]
    %v907 = vld [vmem:[%s903 + $0x18] sm:$0x3]
    %v909 = vsel %vm200, %v902, 0
    %v912 = vsel %vm243, %v907, 0
    %914 = vmatprep.subr.mxu0 0.0
    %915 = vmatpush1.msra.mxu0 0.0
    %916 = vmatprep.subr.mxu0 0.0
    %917 = vmatpush1.msra.mxu0 0.0
    %918 = vmatprep.subr.mxu0 0.0
    %919 = vmatpush1.msra.mxu0 0.0
    %920 = vmatprep.subr.mxu0 0.0
    %921 = vmatpush1.msra.mxu0 0.0
    %922 = vmatprep.subr.mxu0 0.0
    %923 = vmatpush1.msra.mxu0 0.0
    %924 = vmatprep.subr.mxu0 0.0
    %925 = vmatpush1.msra.mxu0 0.0
    %926 = vmatprep.subr.mxu0 0.0
    %927 = vmatpush1.msra.mxu0 0.0
    %928 = vmatprep.subr.mxu0 0.0
    %929 = vmatpush1.msra.mxu0 0.0
    %930 = vmatprep.subr.mxu0 0.0
    %931 = vmatpush1.msra.mxu0 0.0
    %932 = vmatprep.subr.mxu0 0.0
    %933 = vmatpush1.msra.mxu0 0.0
    %934 = vmatprep.subr.mxu0 0.0
    %935 = vmatpush1.msra.mxu0 0.0
    %936 = vmatprep.subr.mxu0 0.0
    %937 = vmatpush1.msra.mxu0 0.0
    %938 = vmatprep.subr.mxu0 0.0
    %939 = vmatpush1.msra.mxu0 %v912
    %940 = vmatprep.subr.mxu0 0.0
    %941 = vmatpush1.msra.mxu0 %v906
    %942 = vmatprep.subr.mxu0 0.0
    %943 = vmatpush1.msra.mxu0 %v905
    %944 = vmatprep.subr.mxu0 0.0
    %945 = vmatpush1.msra.mxu0 %v904
    %946 = vmatprep.subr.mxu0 0.0
    %947 = vmatpush2.msra.mxu0 0.0
    %948 = vmatprep.subr.mxu0 0.0
    %949 = vmatpush2.msra.mxu0 0.0
    %950 = vmatprep.subr.mxu0 0.0
    %951 = vmatpush2.msra.mxu0 0.0
    %952 = vmatprep.subr.mxu0 0.0
    %953 = vmatpush2.msra.mxu0 0.0
    %954 = vmatprep.subr.mxu0 0.0
    %955 = vmatpush2.msra.mxu0 0.0
    %956 = vmatprep.subr.mxu0 0.0
    %957 = vmatpush2.msra.mxu0 0.0
    %958 = vmatprep.subr.mxu0 0.0
    %959 = vmatpush2.msra.mxu0 0.0
    %960 = vmatprep.subr.mxu0 0.0
    %961 = vmatpush2.msra.mxu0 0.0
    %962 = vmatprep.subr.mxu0 0.0
    %963 = vmatpush2.msra.mxu0 0.0
    %964 = vmatprep.subr.mxu0 0.0
    %965 = vmatpush2.msra.mxu0 0.0
    %966 = vmatprep.subr.mxu0 0.0
    %967 = vmatpush2.msra.mxu0 0.0
    %968 = vmatprep.subr.mxu0 0.0
    %969 = vmatpush2.msra.mxu0 0.0
    %970 = vmatprep.subr.mxu0 0.0
    %971 = vmatpush2.msra.mxu0 0.0
    %972 = vmatprep.subr.mxu0 0.0
    %973 = vmatpush2.msra.mxu0 0.0
    %974 = vmatprep.subr.mxu0 0.0
    %975 = vmatpush2.msra.mxu0 0.0
    %976 = vmatprep.subr.mxu0 0.0
    %977 = vmatpush2.msra.mxu0 0.0
    %978 = vmatprep.mubr.f32.mxu0 0.0
    %979 = vmatmul.mubr.f32.gmra.mxu0 %v909
    %v980 = vpop.f32.mrf.mxu0
    %v981 = vadd.f32 0.0, %v980
    %v982 = vpop.f32.mrf.mxu0
    %983 = vdwg.mxu0
    %v984 = vld [vmem:[%s10 + $0x2] sm:$0x1]
    %v985 = vld [vmem:[%s11 + $0x2] sm:$0x1]
    %v986 = vsel %vm200, %v981, 0.0
    %v987 = vrot.slane %v986, 4
    %v988 = vadd.f32 %v986, %v987
    %v989 = vrot.slane %v988, 2
    %v990 = vadd.f32 %v988, %v989
    %v991 = vrot.slane %v990, 1
    %v992 = vadd.f32 %v990, %v991
    %v993 = vmul.f32 %v992, %v208
    %v994 = vmul.f32 %v981, %v981
    %v995 = vsel %vm200, %v994, 0.0
    %v996 = vrot.slane %v995, 4
    %v997 = vadd.f32 %v995, %v996
    %v998 = vrot.slane %v997, 2
    %v999 = vadd.f32 %v997, %v998
    %v1000 = vrot.slane %v999, 1
    %v1001 = vadd.f32 %v999, %v1000
    %v1002 = vmul.f32 %v1001, %v208
    %v1003 = vmul.f32 %v993, %v993
    %v1004 = vsub.f32 %v1002, %v1003
    %v1005 = vsub.f32 %v981, %v993
    %v1006 = vadd.f32 %v1004, 1e-05
    %v1007 = vrsqrt.pop %v1006
    %v1008 = vmul.f32 %v1005, %v1007
    %v1009 = vlaneseq
    %v1010 = vshrl.u32 %v1009, 7
    %v1011 = vsub.s32 0, %v1010
    %v1012 = vrot.slane %v984, %v1011
    %v1013 = vmul.f32 %v1008, %v1012
    %v1014 = vlaneseq
    %v1015 = vshrl.u32 %v1014, 7
    %v1016 = vsub.s32 0, %v1015
    %v1017 = vrot.slane %v985, %v1016
    %v1018 = vadd.f32 %v1013, %v1017
    %v1019 = vmax.f32 %v1018, 0.0
    %s1020 = scalar_lea.vmem %s12, 64
    %v1021 = vld [vmem:[%s1020] sm:$0xff]
    %v1022 = vld [vmem:[%s1020 + $0x8] sm:$0xff]
    %v1023 = vld [vmem:[%s1020 + $0x10] sm:$0xff]
    %v1024 = vld [vmem:[%s1020 + $0x18] sm:$0x3]
    %v1025 = vld [vmem:[%s13 + $0x2] sm:$0x1]
    %v1026 = vlaneseq
    %v1027 = vshrl.u32 %v1026, 7
    %v1028 = vsub.s32 0, %v1027
    %v1029 = vrot.slane %v1025, %v1028
    %v1031 = vsel %vm200, %v1019, 0
    %v1034 = vsel %vm243, %v1024, 0
    %1036 = vmatprep.subr.mxu0 0.0
    %1037 = vmatpush1.msra.mxu0 0.0
    %1038 = vmatprep.subr.mxu0 0.0
    %1039 = vmatpush1.msra.mxu0 0.0
    %1040 = vmatprep.subr.mxu0 0.0
    %1041 = vmatpush1.msra.mxu0 0.0
    %1042 = vmatprep.subr.mxu0 0.0
    %1043 = vmatpush1.msra.mxu0 0.0
    %1044 = vmatprep.subr.mxu0 0.0
    %1045 = vmatpush1.msra.mxu0 0.0
    %1046 = vmatprep.subr.mxu0 0.0
    %1047 = vmatpush1.msra.mxu0 0.0
    %1048 = vmatprep.subr.mxu0 0.0
    %1049 = vmatpush1.msra.mxu0 0.0
    %1050 = vmatprep.subr.mxu0 0.0
    %1051 = vmatpush1.msra.mxu0 0.0
    %1052 = vmatprep.subr.mxu0 0.0
    %1053 = vmatpush1.msra.mxu0 0.0
    %1054 = vmatprep.subr.mxu0 0.0
    %1055 = vmatpush1.msra.mxu0 0.0
    %1056 = vmatprep.subr.mxu0 0.0
    %1057 = vmatpush1.msra.mxu0 0.0
    %1058 = vmatprep.subr.mxu0 0.0
    %1059 = vmatpush1.msra.mxu0 0.0
    %1060 = vmatprep.subr.mxu0 0.0
    %1061 = vmatpush1.msra.mxu0 %v1034
    %1062 = vmatprep.subr.mxu0 0.0
    %1063 = vmatpush1.msra.mxu0 %v1023
    %1064 = vmatprep.subr.mxu0 0.0
    %1065 = vmatpush1.msra.mxu0 %v1022
    %1066 = vmatprep.subr.mxu0 0.0
    %1067 = vmatpush1.msra.mxu0 %v1021
    %1068 = vmatprep.subr.mxu0 0.0
    %1069 = vmatpush2.msra.mxu0 0.0
    %1070 = vmatprep.subr.mxu0 0.0
    %1071 = vmatpush2.msra.mxu0 0.0
    %1072 = vmatprep.subr.mxu0 0.0
    %1073 = vmatpush2.msra.mxu0 0.0
    %1074 = vmatprep.subr.mxu0 0.0
    %1075 = vmatpush2.msra.mxu0 0.0
    %1076 = vmatprep.subr.mxu0 0.0
    %1077 = vmatpush2.msra.mxu0 0.0
    %1078 = vmatprep.subr.mxu0 0.0
    %1079 = vmatpush2.msra.mxu0 0.0
    %1080 = vmatprep.subr.mxu0 0.0
    %1081 = vmatpush2.msra.mxu0 0.0
    %1082 = vmatprep.subr.mxu0 0.0
    %1083 = vmatpush2.msra.mxu0 0.0
    %1084 = vmatprep.subr.mxu0 0.0
    %1085 = vmatpush2.msra.mxu0 0.0
    %1086 = vmatprep.subr.mxu0 0.0
    %1087 = vmatpush2.msra.mxu0 0.0
    %1088 = vmatprep.subr.mxu0 0.0
    %1089 = vmatpush2.msra.mxu0 0.0
    %1090 = vmatprep.subr.mxu0 0.0
    %1091 = vmatpush2.msra.mxu0 0.0
    %1092 = vmatprep.subr.mxu0 0.0
    %1093 = vmatpush2.msra.mxu0 0.0
    %1094 = vmatprep.subr.mxu0 0.0
    %1095 = vmatpush2.msra.mxu0 0.0
    %1096 = vmatprep.subr.mxu0 0.0
    %1097 = vmatpush2.msra.mxu0 0.0
    %1098 = vmatprep.subr.mxu0 0.0
    %1099 = vmatpush2.msra.mxu0 0.0
    %1100 = vmatprep.mubr.f32.mxu0 0.0
    %1101 = vmatmul.mubr.f32.gmra.mxu0 %v1031
    %v1102 = vpop.f32.mrf.mxu0
    %v1103 = vadd.f32 %v1029, %v1102
    %v1104 = vpop.f32.mrf.mxu0
    %1105 = vdwg.mxu0
    %v1106 = vstv %s785
    %v1107 = vmul.f32 %v1106, %v1103
    %v1108 = vsub.f32 %v790, %v1107
    %v1109 = vmul.f32 %v1103, %v1108
    %v1110 = vsel %vm99, %v1109, 0.0
    %1111 = vadd.xlane.f32.xlu0 %v1110
    %v1112 = vpop.xlane.xlu0 %1111
    %v1113 = vadd.f32 %v779, %v1112
    %s1114 = smul.f32 %s785, 2.0
    %v1115 = vstv %s1114
    %v1116 = vmul.f32 %v1115, %v1103
    %v1117 = vsub.f32 %v784, %v1116
    %v1118 = vadd.f32 %v1117, %v790
    %s1119 = sld [smem:[#allocation3 + $0x4]]
    %s1120 = sld [smem:[#allocation6 + $0x4]]
    %s1121 = scalar_lea.vmem %s5, 32
    %v1122 = vld [vmem:[%s1121] sm:$0xff]
    %v1123 = vstv %s1120
    %v1124 = vmul.f32 %v1123, %v1122
    %s1125 = scalar_lea.vmem %s6, 48
    %v1126 = vld [vmem:[%s1125] sm:$0xff]
    %v1127 = vld [vmem:[%s1125 + $0x8] sm:$0xff]
    %v1129 = vsel %vm99, %v1118, 0
    %1131 = vmatprep.subr.mxu0 0.0
    %1132 = vmatpush1.msra.mxu0 0.0
    %1133 = vmatprep.subr.mxu0 0.0
    %1134 = vmatpush1.msra.mxu0 0.0
    %1135 = vmatprep.subr.mxu0 0.0
    %1136 = vmatpush1.msra.mxu0 0.0
    %1137 = vmatprep.subr.mxu0 0.0
    %1138 = vmatpush1.msra.mxu0 0.0
    %1139 = vmatprep.subr.mxu0 0.0
    %1140 = vmatpush1.msra.mxu0 0.0
    %1141 = vmatprep.subr.mxu0 0.0
    %1142 = vmatpush1.msra.mxu0 0.0
    %1143 = vmatprep.subr.mxu0 0.0
    %1144 = vmatpush1.msra.mxu0 0.0
    %1145 = vmatprep.subr.mxu0 0.0
    %1146 = vmatpush1.msra.mxu0 0.0
    %1147 = vmatprep.subr.mxu0 0.0
    %1148 = vmatpush1.msra.mxu0 0.0
    %1149 = vmatprep.subr.mxu0 0.0
    %1150 = vmatpush1.msra.mxu0 0.0
    %1151 = vmatprep.subr.mxu0 0.0
    %1152 = vmatpush1.msra.mxu0 0.0
    %1153 = vmatprep.subr.mxu0 0.0
    %1154 = vmatpush1.msra.mxu0 0.0
    %1155 = vmatprep.subr.mxu0 0.0
    %1156 = vmatpush1.msra.mxu0 0.0
    %1157 = vmatprep.subr.mxu0 0.0
    %1158 = vmatpush1.msra.mxu0 0.0
    %1159 = vmatprep.subr.mxu0 0.0
    %1160 = vmatpush1.msra.mxu0 %v1127
    %1161 = vmatprep.subr.mxu0 0.0
    %1162 = vmatpush1.msra.mxu0 %v1126
    %1163 = vmatprep.subr.mxu0 0.0
    %1164 = vmatpush2.msra.mxu0 0.0
    %1165 = vmatprep.subr.mxu0 0.0
    %1166 = vmatpush2.msra.mxu0 0.0
    %1167 = vmatprep.subr.mxu0 0.0
    %1168 = vmatpush2.msra.mxu0 0.0
    %1169 = vmatprep.subr.mxu0 0.0
    %1170 = vmatpush2.msra.mxu0 0.0
    %1171 = vmatprep.subr.mxu0 0.0
    %1172 = vmatpush2.msra.mxu0 0.0
    %1173 = vmatprep.subr.mxu0 0.0
    %1174 = vmatpush2.msra.mxu0 0.0
    %1175 = vmatprep.subr.mxu0 0.0
    %1176 = vmatpush2.msra.mxu0 0.0
    %1177 = vmatprep.subr.mxu0 0.0
    %1178 = vmatpush2.msra.mxu0 0.0
    %1179 = vmatprep.subr.mxu0 0.0
    %1180 = vmatpush2.msra.mxu0 0.0
    %1181 = vmatprep.subr.mxu0 0.0
    %1182 = vmatpush2.msra.mxu0 0.0
    %1183 = vmatprep.subr.mxu0 0.0
    %1184 = vmatpush2.msra.mxu0 0.0
    %1185 = vmatprep.subr.mxu0 0.0
    %1186 = vmatpush2.msra.mxu0 0.0
    %1187 = vmatprep.subr.mxu0 0.0
    %1188 = vmatpush2.msra.mxu0 0.0
    %1189 = vmatprep.subr.mxu0 0.0
    %1190 = vmatpush2.msra.mxu0 0.0
    %1191 = vmatprep.subr.mxu0 0.0
    %1192 = vmatpush2.msra.mxu0 0.0
    %1193 = vmatprep.subr.mxu0 0.0
    %1194 = vmatpush2.msra.mxu0 0.0
    %1195 = vmatprep.mubr.f32.mxu0 0.0
    %1196 = vmatmul.mubr.f32.gmra.mxu0 %v1129
    %v1197 = vpop.f32.mrf.mxu0
    %v1198 = vadd.f32 0.0, %v1197
    %v1199 = vpop.f32.mrf.mxu0
    %1200 = vdwg.mxu0
    %v1201 = vld [vmem:[%s7 + $0x3] sm:$0x1]
    %v1202 = vld [vmem:[%s8 + $0x3] sm:$0x1]
    %v1203 = vsel %vm200, %v1198, 0.0
    %v1204 = vrot.slane %v1203, 4
    %v1205 = vadd.f32 %v1203, %v1204
    %v1206 = vrot.slane %v1205, 2
    %v1207 = vadd.f32 %v1205, %v1206
    %v1208 = vrot.slane %v1207, 1
    %v1209 = vadd.f32 %v1207, %v1208
    %v1210 = vmul.f32 %v1209, %v208
    %v1211 = vmul.f32 %v1198, %v1198
    %v1212 = vsel %vm200, %v1211, 0.0
    %v1213 = vrot.slane %v1212, 4
    %v1214 = vadd.f32 %v1212, %v1213
    %v1215 = vrot.slane %v1214, 2
    %v1216 = vadd.f32 %v1214, %v1215
    %v1217 = vrot.slane %v1216, 1
    %v1218 = vadd.f32 %v1216, %v1217
    %v1219 = vmul.f32 %v1218, %v208
    %v1220 = vmul.f32 %v1210, %v1210
    %v1221 = vsub.f32 %v1219, %v1220
    %v1222 = vsub.f32 %v1198, %v1210
    %v1223 = vadd.f32 %v1221, 1e-05
    %v1224 = vrsqrt.pop %v1223
    %v1225 = vmul.f32 %v1222, %v1224
    %v1226 = vlaneseq
    %v1227 = vshrl.u32 %v1226, 7
    %v1228 = vsub.s32 0, %v1227
    %v1229 = vrot.slane %v1201, %v1228
    %v1230 = vmul.f32 %v1225, %v1229
    %v1231 = vlaneseq
    %v1232 = vshrl.u32 %v1231, 7
    %v1233 = vsub.s32 0, %v1232
    %v1234 = vrot.slane %v1202, %v1233
    %v1235 = vadd.f32 %v1230, %v1234
    %v1236 = vmax.f32 %v1235, 0.0
    %s1237 = scalar_lea.vmem %s9, 96
    %v1238 = vld [vmem:[%s1237] sm:$0xff]
    %v1239 = vld [vmem:[%s1237 + $0x8] sm:$0xff]
    %v1240 = vld [vmem:[%s1237 + $0x10] sm:$0xff]
    %v1241 = vld [vmem:[%s1237 + $0x18] sm:$0x3]
    %v1243 = vsel %vm200, %v1236, 0
    %v1246 = vsel %vm243, %v1241, 0
    %1248 = vmatprep.subr.mxu0 0.0
    %1249 = vmatpush1.msra.mxu0 0.0
    %1250 = vmatprep.subr.mxu0 0.0
    %1251 = vmatpush1.msra.mxu0 0.0
    %1252 = vmatprep.subr.mxu0 0.0
    %1253 = vmatpush1.msra.mxu0 0.0
    %1254 = vmatprep.subr.mxu0 0.0
    %1255 = vmatpush1.msra.mxu0 0.0
    %1256 = vmatprep.subr.mxu0 0.0
    %1257 = vmatpush1.msra.mxu0 0.0
    %1258 = vmatprep.subr.mxu0 0.0
    %1259 = vmatpush1.msra.mxu0 0.0
    %1260 = vmatprep.subr.mxu0 0.0
    %1261 = vmatpush1.msra.mxu0 0.0
    %1262 = vmatprep.subr.mxu0 0.0
    %1263 = vmatpush1.msra.mxu0 0.0
    %1264 = vmatprep.subr.mxu0 0.0
    %1265 = vmatpush1.msra.mxu0 0.0
    %1266 = vmatprep.subr.mxu0 0.0
    %1267 = vmatpush1.msra.mxu0 0.0
    %1268 = vmatprep.subr.mxu0 0.0
    %1269 = vmatpush1.msra.mxu0 0.0
    %1270 = vmatprep.subr.mxu0 0.0
    %1271 = vmatpush1.msra.mxu0 0.0
    %1272 = vmatprep.subr.mxu0 0.0
    %1273 = vmatpush1.msra.mxu0 %v1246
    %1274 = vmatprep.subr.mxu0 0.0
    %1275 = vmatpush1.msra.mxu0 %v1240
    %1276 = vmatprep.subr.mxu0 0.0
    %1277 = vmatpush1.msra.mxu0 %v1239
    %1278 = vmatprep.subr.mxu0 0.0
    %1279 = vmatpush1.msra.mxu0 %v1238
    %1280 = vmatprep.subr.mxu0 0.0
    %1281 = vmatpush2.msra.mxu0 0.0
    %1282 = vmatprep.subr.mxu0 0.0
    %1283 = vmatpush2.msra.mxu0 0.0
    %1284 = vmatprep.subr.mxu0 0.0
    %1285 = vmatpush2.msra.mxu0 0.0
    %1286 = vmatprep.subr.mxu0 0.0
    %1287 = vmatpush2.msra.mxu0 0.0
    %1288 = vmatprep.subr.mxu0 0.0
    %1289 = vmatpush2.msra.mxu0 0.0
    %1290 = vmatprep.subr.mxu0 0.0
    %1291 = vmatpush2.msra.mxu0 0.0
    %1292 = vmatprep.subr.mxu0 0.0
    %1293 = vmatpush2.msra.mxu0 0.0
    %1294 = vmatprep.subr.mxu0 0.0
    %1295 = vmatpush2.msra.mxu0 0.0
    %1296 = vmatprep.subr.mxu0 0.0
    %1297 = vmatpush2.msra.mxu0 0.0
    %1298 = vmatprep.subr.mxu0 0.0
    %1299 = vmatpush2.msra.mxu0 0.0
    %1300 = vmatprep.subr.mxu0 0.0
    %1301 = vmatpush2.msra.mxu0 0.0
    %1302 = vmatprep.subr.mxu0 0.0
    %1303 = vmatpush2.msra.mxu0 0.0
    %1304 = vmatprep.subr.mxu0 0.0
    %1305 = vmatpush2.msra.mxu0 0.0
    %1306 = vmatprep.subr.mxu0 0.0
    %1307 = vmatpush2.msra.mxu0 0.0
    %1308 = vmatprep.subr.mxu0 0.0
    %1309 = vmatpush2.msra.mxu0 0.0
    %1310 = vmatprep.subr.mxu0 0.0
    %1311 = vmatpush2.msra.mxu0 0.0
    %1312 = vmatprep.mubr.f32.mxu0 0.0
    %1313 = vmatmul.mubr.f32.gmra.mxu0 %v1243
    %v1314 = vpop.f32.mrf.mxu0
    %v1315 = vadd.f32 0.0, %v1314
    %v1316 = vpop.f32.mrf.mxu0
    %1317 = vdwg.mxu0
    %v1318 = vld [vmem:[%s10 + $0x3] sm:$0x1]
    %v1319 = vld [vmem:[%s11 + $0x3] sm:$0x1]
    %v1320 = vsel %vm200, %v1315, 0.0
    %v1321 = vrot.slane %v1320, 4
    %v1322 = vadd.f32 %v1320, %v1321
    %v1323 = vrot.slane %v1322, 2
    %v1324 = vadd.f32 %v1322, %v1323
    %v1325 = vrot.slane %v1324, 1
    %v1326 = vadd.f32 %v1324, %v1325
    %v1327 = vmul.f32 %v1326, %v208
    %v1328 = vmul.f32 %v1315, %v1315
    %v1329 = vsel %vm200, %v1328, 0.0
    %v1330 = vrot.slane %v1329, 4
    %v1331 = vadd.f32 %v1329, %v1330
    %v1332 = vrot.slane %v1331, 2
    %v1333 = vadd.f32 %v1331, %v1332
    %v1334 = vrot.slane %v1333, 1
    %v1335 = vadd.f32 %v1333, %v1334
    %v1336 = vmul.f32 %v1335, %v208
    %v1337 = vmul.f32 %v1327, %v1327
    %v1338 = vsub.f32 %v1336, %v1337
    %v1339 = vsub.f32 %v1315, %v1327
    %v1340 = vadd.f32 %v1338, 1e-05
    %v1341 = vrsqrt.pop %v1340
    %v1342 = vmul.f32 %v1339, %v1341
    %v1343 = vlaneseq
    %v1344 = vshrl.u32 %v1343, 7
    %v1345 = vsub.s32 0, %v1344
    %v1346 = vrot.slane %v1318, %v1345
    %v1347 = vmul.f32 %v1342, %v1346
    %v1348 = vlaneseq
    %v1349 = vshrl.u32 %v1348, 7
    %v1350 = vsub.s32 0, %v1349
    %v1351 = vrot.slane %v1319, %v1350
    %v1352 = vadd.f32 %v1347, %v1351
    %v1353 = vmax.f32 %v1352, 0.0
    %s1354 = scalar_lea.vmem %s12, 96
    %v1355 = vld [vmem:[%s1354] sm:$0xff]
    %v1356 = vld [vmem:[%s1354 + $0x8] sm:$0xff]
    %v1357 = vld [vmem:[%s1354 + $0x10] sm:$0xff]
    %v1358 = vld [vmem:[%s1354 + $0x18] sm:$0x3]
    %v1359 = vld [vmem:[%s13 + $0x3] sm:$0x1]
    %v1360 = vlaneseq
    %v1361 = vshrl.u32 %v1360, 7
    %v1362 = vsub.s32 0, %v1361
    %v1363 = vrot.slane %v1359, %v1362
    %v1365 = vsel %vm200, %v1353, 0
    %v1368 = vsel %vm243, %v1358, 0
    %1370 = vmatprep.subr.mxu0 0.0
    %1371 = vmatpush1.msra.mxu0 0.0
    %1372 = vmatprep.subr.mxu0 0.0
    %1373 = vmatpush1.msra.mxu0 0.0
    %1374 = vmatprep.subr.mxu0 0.0
    %1375 = vmatpush1.msra.mxu0 0.0
    %1376 = vmatprep.subr.mxu0 0.0
    %1377 = vmatpush1.msra.mxu0 0.0
    %1378 = vmatprep.subr.mxu0 0.0
    %1379 = vmatpush1.msra.mxu0 0.0
    %1380 = vmatprep.subr.mxu0 0.0
    %1381 = vmatpush1.msra.mxu0 0.0
    %1382 = vmatprep.subr.mxu0 0.0
    %1383 = vmatpush1.msra.mxu0 0.0
    %1384 = vmatprep.subr.mxu0 0.0
    %1385 = vmatpush1.msra.mxu0 0.0
    %1386 = vmatprep.subr.mxu0 0.0
    %1387 = vmatpush1.msra.mxu0 0.0
    %1388 = vmatprep.subr.mxu0 0.0
    %1389 = vmatpush1.msra.mxu0 0.0
    %1390 = vmatprep.subr.mxu0 0.0
    %1391 = vmatpush1.msra.mxu0 0.0
    %1392 = vmatprep.subr.mxu0 0.0
    %1393 = vmatpush1.msra.mxu0 0.0
    %1394 = vmatprep.subr.mxu0 0.0
    %1395 = vmatpush1.msra.mxu0 %v1368
    %1396 = vmatprep.subr.mxu0 0.0
    %1397 = vmatpush1.msra.mxu0 %v1357
    %1398 = vmatprep.subr.mxu0 0.0
    %1399 = vmatpush1.msra.mxu0 %v1356
    %1400 = vmatprep.subr.mxu0 0.0
    %1401 = vmatpush1.msra.mxu0 %v1355
    %1402 = vmatprep.subr.mxu0 0.0
    %1403 = vmatpush2.msra.mxu0 0.0
    %1404 = vmatprep.subr.mxu0 0.0
    %1405 = vmatpush2.msra.mxu0 0.0
    %1406 = vmatprep.subr.mxu0 0.0
    %1407 = vmatpush2.msra.mxu0 0.0
    %1408 = vmatprep.subr.mxu0 0.0
    %1409 = vmatpush2.msra.mxu0 0.0
    %1410 = vmatprep.subr.mxu0 0.0
    %1411 = vmatpush2.msra.mxu0 0.0
    %1412 = vmatprep.subr.mxu0 0.0
    %1413 = vmatpush2.msra.mxu0 0.0
    %1414 = vmatprep.subr.mxu0 0.0
    %1415 = vmatpush2.msra.mxu0 0.0
    %1416 = vmatprep.subr.mxu0 0.0
    %1417 = vmatpush2.msra.mxu0 0.0
    %1418 = vmatprep.subr.mxu0 0.0
    %1419 = vmatpush2.msra.mxu0 0.0
    %1420 = vmatprep.subr.mxu0 0.0
    %1421 = vmatpush2.msra.mxu0 0.0
    %1422 = vmatprep.subr.mxu0 0.0
    %1423 = vmatpush2.msra.mxu0 0.0
    %1424 = vmatprep.subr.mxu0 0.0
    %1425 = vmatpush2.msra.mxu0 0.0
    %1426 = vmatprep.subr.mxu0 0.0
    %1427 = vmatpush2.msra.mxu0 0.0
    %1428 = vmatprep.subr.mxu0 0.0
    %1429 = vmatpush2.msra.mxu0 0.0
    %1430 = vmatprep.subr.mxu0 0.0
    %1431 = vmatpush2.msra.mxu0 0.0
    %1432 = vmatprep.subr.mxu0 0.0
    %1433 = vmatpush2.msra.mxu0 0.0
    %1434 = vmatprep.mubr.f32.mxu0 0.0
    %1435 = vmatmul.mubr.f32.gmra.mxu0 %v1365
    %v1436 = vpop.f32.mrf.mxu0
    %v1437 = vadd.f32 %v1363, %v1436
    %v1438 = vpop.f32.mrf.mxu0
    %1439 = vdwg.mxu0
    %v1440 = vstv %s1119
    %v1441 = vmul.f32 %v1440, %v1437
    %v1442 = vsub.f32 %v1124, %v1441
    %v1443 = vmul.f32 %v1437, %v1442
    %v1444 = vsel %vm99, %v1443, 0.0
    %1445 = vadd.xlane.f32.xlu0 %v1444
    %v1446 = vpop.xlane.xlu0 %1445
    %v1447 = vadd.f32 %v1113, %v1446
    %s1448 = smul.f32 %s1119, 2.0
    %v1449 = vstv %s1448
    %v1450 = vmul.f32 %v1449, %v1437
    %v1451 = vsub.f32 %v1118, %v1450
    %v1452 = vadd.f32 %v1451, %v1124
    %vm1453 = vcmask 7168
    %1454 = vst.msk [vmem:[%s14] sm:$0xff] %vm1453, %v1447
    %1455 = vst.msk [vmem:[#allocation8] sm:$0xff] %vm99, %v1452
    // Predicated region
    $region66: #{tpu_custom_call.1} parent=1 // pred_check
      _
    $region67: #{tpu_custom_call.1} parent=1 // pred_check_branch
      %1457 = sbr.rel (0) target = $region69
    $region68: #{tpu_custom_call.1} parent=1 // pred_region
      _
    $region69: #{tpu_custom_call.1} parent=1 // pred_fallthru
      _
    // Predicated region
    $region70: #{tpu_custom_call.1} parent=1 // pred_check
      _
    $region71: #{tpu_custom_call.1} parent=1 // pred_check_branch
      %1459 = sbr.rel (0) target = $region73
    $region72: #{tpu_custom_call.1} parent=1 // pred_region
      %s1461 = ssub.s32 128, 128
      %1462 = vsyncadd [#allocation4], %s1461
      %s1464 = sshll.u32 [#allocation8], 4
      %s1465 = int_to_ptr.vmem [resolvable:$true] %s1464
      %1467 = dma.vmem_to_hbm [thread:$0]  %s1465, 128, %s15, [#allocation4]
    $region73: #{tpu_custom_call.1} parent=1 // pred_fallthru
      _
    // Predicated region
    $region74: #{tpu_custom_call.1} parent=1 // pred_check
      _
    $region75: #{tpu_custom_call.1} parent=1 // pred_check_branch
      %1469 = sbr.rel (0) target = $region77
    $region76: #{tpu_custom_call.1} parent=1 // pred_region
      _
    $region77: #{tpu_custom_call.1} parent=1 // pred_fallthru
      _
    // Predicated region
    $region78: #{tpu_custom_call.1} parent=1 // pred_check
      _
    $region79: #{tpu_custom_call.1} parent=1 // pred_check_branch
      %1471 = sbr.rel (0) target = $region81
    $region80: #{tpu_custom_call.1} parent=1 // pred_region
      %1472 = dma.done [#allocation4], 128
    $region81: #{tpu_custom_call.1} parent=1 // pred_fallthru
      _
    %1473 = vsyncpa [#allocation4], 1
    %1474 = vsyncpa [#allocation5], 1
    %1475 = vsyncpa [#allocation7], 1

</llo_original>
